<compile_context>
chip_gen: v7x
topology: tpu7x:2x2x1
jax: 0.10.0
libtpu: 0.0.40
codegen_flags: <defaults>
</compile_context>

<pallas_src>
import functools

import jax
import jax.numpy as jnp
from jax.experimental import pallas as pl
from jax.experimental.pallas import tpu as pltpu

EPS = 1e-5  # BatchNorm eps


# --------------------------------------------------------------------------
# 3x3 conv (stride 1, pad 1) + folded BN + ReLU as one im2col matmul per image.
# grid = (B,);  kernel:  (H*W, 9*Cin) @ (9*Cin, Cout)  ->  BN affine  ->  ReLU
# --------------------------------------------------------------------------
def _conv_mm_kernel(x_ref, w_ref, s_ref, b_ref, o_ref):
    # x_ref: (1, H*W, 9*Cin) f32 im2col LHS ; w_ref: (9*Cin, Cout) bf16
    # s_ref/b_ref: (1, Cout) folded BN scale/bias ; o_ref: (1, H*W, Cout)
    y = jnp.dot(x_ref[0].astype(jnp.bfloat16), w_ref[...],
                preferred_element_type=jnp.float32)
    y = y * s_ref[...] + b_ref[...]
    o_ref[0] = jnp.maximum(y, 0.0)


def conv3x3_bn_relu(x_nhwc, w_col, scale, bias):
    B, H, W, Cin = x_nhwc.shape
    K = 9 * Cin
    Cout = w_col.shape[-1]
    # im2col in the wrapper: 9 shifted copies (pure layout plumbing, small shapes).
    xp = jnp.pad(x_nhwc, ((0, 0), (1, 1), (1, 1), (0, 0)))
    cols = [xp[:, dy:dy + H, dx:dx + W, :] for dy in range(3) for dx in range(3)]
    x_col = jnp.concatenate(cols, axis=-1).reshape(B, H * W, K)

    out = pl.pallas_call(
        _conv_mm_kernel,
        out_shape=jax.ShapeDtypeStruct((B, H * W, Cout), jnp.float32),
        grid=(B,),
        in_specs=[
            pl.BlockSpec((1, H * W, K), lambda b: (b, 0, 0)),
            pl.BlockSpec((K, Cout), lambda b: (0, 0)),
            pl.BlockSpec((1, Cout), lambda b: (0, 0)),
            pl.BlockSpec((1, Cout), lambda b: (0, 0)),
        ],
        out_specs=pl.BlockSpec((1, H * W, Cout), lambda b: (b, 0, 0)),
        compiler_params=pltpu.CompilerParams(dimension_semantics=("parallel",)),
    )(x_col, w_col, scale.reshape(1, Cout), bias.reshape(1, Cout))
    return out.reshape(B, H, W, Cout)


# --------------------------------------------------------------------------
# Precise RoI Pooling (PrRoIPool2D). Separable integration weights are built
# analytically in JAX (elementwise glue); the pooling contraction
#   pooled[b] = W2[b] @ feat_flat[b]
# runs as a Pallas matmul with ALL proposals of image b in one grid step, so
# the feature block is DMA'd once per image.
# TODO(synk): ROI coords are not clamped to the feature map (matches prior impl).
# --------------------------------------------------------------------------
def _prroi_matmul_kernel(w2_ref, f_ref, o_ref):
    o_ref[0] = jnp.dot(w2_ref[0], f_ref[0], preferred_element_type=jnp.float32)


def prroi_pool(feat_nhwc, rois_xyxy, pooled, spatial_scale):
    # feat_nhwc: (B, H, W, C) ; rois_xyxy: (B, P, 4) grouped per image
    B, H, W, C = feat_nhwc.shape
    P = rois_xyxy.shape[1]

    x1 = rois_xyxy[..., 0] * spatial_scale
    y1 = rois_xyxy[..., 1] * spatial_scale
    x2 = rois_xyxy[..., 2] * spatial_scale
    y2 = rois_xyxy[..., 3] * spatial_scale
    bin_w = jnp.maximum(x2 - x1, 0.0) / pooled
    bin_h = jnp.maximum(y2 - y1, 0.0) / pooled

    idx = jnp.arange(pooled, dtype=jnp.float32)
    wx1 = x1[..., None] + bin_w[..., None] * idx          # (B, P, pp)
    wx2 = wx1 + bin_w[..., None]
    wy1 = y1[..., None] + bin_h[..., None] * idx
    wy2 = wy1 + bin_h[..., None]

    def tri_cdf(t):
        # integral of max(0, 1-|s|) from -inf to t
        t = jnp.clip(t, -1.0, 1.0)
        return jnp.where(t <= 0.0, 0.5 * (t + 1.0) ** 2, 1.0 - 0.5 * (1.0 - t) ** 2)

    qx = jnp.arange(W, dtype=jnp.float32)
    qy = jnp.arange(H, dtype=jnp.float32)
    wght_x = tri_cdf(wx2[..., None] - qx) - tri_cdf(wx1[..., None] - qx)  # (B,P,pp,W)
    wght_y = tri_cdf(wy2[..., None] - qy) - tri_cdf(wy1[..., None] - qy)  # (B,P,pp,H)

    win = bin_w * bin_h
    inv = jnp.where(win > 0.0, 1.0 / jnp.maximum(win, 1e-20), 0.0)        # (B, P)

    w2 = (wght_y[:, :, :, None, :, None] * wght_x[:, :, None, :, None, :]
          * inv[:, :, None, None, None, None])                           # (B,P,ph,pw,H,W)
    R = P * pooled * pooled
    w2 = w2.reshape(B, R, H * W)

    feat_flat = feat_nhwc.reshape(B, H * W, C)
    out = pl.pallas_call(
        _prroi_matmul_kernel,
        out_shape=jax.ShapeDtypeStruct((B, R, C), jnp.float32),
        grid=(B,),
        in_specs=[
            pl.BlockSpec((1, R, H * W), lambda b: (b, 0, 0)),
            pl.BlockSpec((1, H * W, C), lambda b: (b, 0, 0)),
        ],
        out_specs=pl.BlockSpec((1, R, C), lambda b: (b, 0, 0)),
        compiler_params=pltpu.CompilerParams(dimension_semantics=("parallel",)),
    )(w2, feat_flat)
    return out.reshape(B, P, pooled * pooled, C)


# --------------------------------------------------------------------------
# (N, K) @ (K, M) matmul + folded BN affine (+ ReLU), tiled over M ("parallel")
# and K ("arbitrary"); accumulates directly into the resident output block.
# Weights arrive in bf16, accumulation in f32.  Used for fc1_r / fc1_t.
# --------------------------------------------------------------------------
def _mm_affine_kernel(relu, x_ref, w_ref, s_ref, b_ref, o_ref):
    k = pl.program_id(1)

    @pl.when(k == 0)
    def _():
        o_ref[...] = jnp.zeros_like(o_ref)

    o_ref[...] += jnp.dot(x_ref[...].astype(jnp.bfloat16), w_ref[...],
                          preferred_element_type=jnp.float32)

    @pl.when(k == pl.num_programs(1) - 1)
    def _():
        y = o_ref[...] * s_ref[...] + b_ref[...]
        if relu:
            y = jnp.maximum(y, 0.0)
        o_ref[...] = y


def _pick_tk(K, max_tk=2048):
    if K <= max_tk:
        return K
    best = None
    for tk in range(128, max_tk + 1, 128):
        if K % tk == 0:
            best = tk
    if best is None:
        raise ValueError(f"K={K} has no 128-multiple tile")
    return best


def matmul_affine(x, w, scale, bias, relu, tm=512):
    N, K = x.shape
    M = w.shape[1]
    tm = min(tm, M)
    assert M % tm == 0
    tk = _pick_tk(K)
    kernel = functools.partial(_mm_affine_kernel, relu)
    return pl.pallas_call(
        kernel,
        out_shape=jax.ShapeDtypeStruct((N, M), jnp.float32),
        grid=(M // tm, K // tk),
        in_specs=[
            pl.BlockSpec((N, tk), lambda m, k: (0, k)),
            pl.BlockSpec((tk, tm), lambda m, k: (k, m)),
            pl.BlockSpec((1, tm), lambda m, k: (0, m)),
            pl.BlockSpec((1, tm), lambda m, k: (0, m)),
        ],
        out_specs=pl.BlockSpec((N, tm), lambda m, k: (0, m)),
        compiler_params=pltpu.CompilerParams(
            dimension_semantics=("parallel", "arbitrary")),
    )(x, w, scale.reshape(1, M), bias.reshape(1, M))


# --------------------------------------------------------------------------
# Fused head: fc3_rt = x * modulation ; fc3_rt2 = ReLU(BN(fc3_rt @ W_rt)) ;
# bb = fc3_rt2 @ W_bb + b_bb   (bb_predictor fused; output lane-padded to 128).
# --------------------------------------------------------------------------
def _fused_head_kernel(x_ref, m_ref, w1_ref, s1_ref, b1_ref, w2_ref, b2_ref, o_ref):
    xm = (x_ref[...] * m_ref[...]).astype(jnp.bfloat16)
    h = jnp.dot(xm, w1_ref[...], preferred_element_type=jnp.float32)
    h = jnp.maximum(h * s1_ref[...] + b1_ref[...], 0.0)
    y = jnp.dot(h.astype(jnp.bfloat16), w2_ref[...],
                preferred_element_type=jnp.float32) + b2_ref[...]
    o_ref[...] = y


def fused_head(x, m, w1, s1, b1, w2p, b2p):
    N, K = x.shape
    M1 = w1.shape[1]
    Mp = w2p.shape[1]
    return pl.pallas_call(
        _fused_head_kernel,
        out_shape=jax.ShapeDtypeStruct((N, Mp), jnp.float32),
        grid=(1,),
        in_specs=[
            pl.BlockSpec((N, K), lambda i: (0, 0)),
            pl.BlockSpec((N, K), lambda i: (0, 0)),
            pl.BlockSpec((K, M1), lambda i: (0, 0)),
            pl.BlockSpec((1, M1), lambda i: (0, 0)),
            pl.BlockSpec((1, M1), lambda i: (0, 0)),
            pl.BlockSpec((M1, Mp), lambda i: (0, 0)),
            pl.BlockSpec((1, Mp), lambda i: (0, 0)),
        ],
        out_specs=pl.BlockSpec((N, Mp), lambda i: (0, 0)),
        compiler_params=pltpu.CompilerParams(dimension_semantics=("arbitrary",)),
    )(x, m, w1, s1.reshape(1, M1), b1.reshape(1, M1), w2p, b2p.reshape(1, Mp))


# --------------------------------------------------------------------------
# Deterministic parameter init (kaiming_normal fan_in, biases 0, BN gamma ~ U(0,1),
# beta 0, running stats (0,1) folded into scale/bias). Matmul weights in bf16.
# NOTE: weight layout is HWIO / (ph,pw,c) contraction order — loading real PyTorch
# checkpoints would require transposing from OIHW.
# --------------------------------------------------------------------------
def _kaiming_normal(key, shape, fan_in):
    std = (2.0 / fan_in) ** 0.5
    return std * jax.random.normal(key, shape, dtype=jnp.float32)


def init_params(key, input_dim=256, pred_input_dim=256):
    keys = jax.random.split(key, 13)
    params = {}

    def conv_bn(kw, kg, cin, cout, ksz):
        w = _kaiming_normal(kw, (ksz, ksz, cin, cout), cin * ksz * ksz)
        gamma = jax.random.uniform(kg, (cout,), dtype=jnp.float32)
        scale = gamma / (1.0 + EPS) ** 0.5       # eval BN: mean 0, var 1
        bias = jnp.zeros((cout,), jnp.float32)   # conv bias 0, BN beta 0
        return w, scale, bias

    w, s, b = conv_bn(keys[0], keys[1], input_dim, 256, 3)
    params['conv1_r'] = (w.reshape(9 * input_dim, 256).astype(jnp.bfloat16), s, b)
    w, s, b = conv_bn(keys[2], keys[3], input_dim, 256, 3)
    params['conv1_t'] = (w.reshape(9 * input_dim, 256).astype(jnp.bfloat16), s, b)
    w, s, b = conv_bn(keys[4], keys[5], 256, pred_input_dim, 3)
    params['conv2_t'] = (w.reshape(9 * 256, pred_input_dim).astype(jnp.bfloat16), s, b)

    # fc1_r: Conv2d(pred, 1024, k=5, pad=0) on the 5x5 pooled map == matmul
    w, s, b = conv_bn(keys[6], keys[7], pred_input_dim, 1024, 5)
    params['fc1_r'] = (w.reshape(25 * pred_input_dim, 1024).astype(jnp.bfloat16), s, b)
    # fc1_t: Conv2d(pred, 1024, k=7, pad=0) on the 7x7 pooled map == matmul
    w, s, b = conv_bn(keys[8], keys[9], pred_input_dim, 1024, 7)
    params['fc1_t'] = (w.reshape(49 * pred_input_dim, 1024).astype(jnp.bfloat16), s, b)

    # fc1_rt: LinearBlock(1024, 1024) = Linear + BN + ReLU
    w_rt = _kaiming_normal(keys[10], (1024, 1024), 1024)
    gamma_rt = jax.random.uniform(keys[11], (1024,), dtype=jnp.float32)
    params['fc1_rt'] = (w_rt.astype(jnp.bfloat16),
                        gamma_rt / (1.0 + EPS) ** 0.5,
                        jnp.zeros((1024,), jnp.float32))

    # bb_predictor: Linear(1024, 4), zero bias; lane-padded to 128 output columns.
    w_bb = _kaiming_normal(keys[12], (1024, 4), 1024)
    w_bb_p = jnp.zeros((1024, 128), jnp.float32).at[:, :4].set(w_bb)
    params['bb_predictor'] = (w_bb_p.astype(jnp.bfloat16),
                              jnp.zeros((128,), jnp.float32))
    return params


# --------------------------------------------------------------------------
# Full forward (mirrors FPNBBRNetHRCorr.forward)
# --------------------------------------------------------------------------
def fpn_bbr_forward(params, feat1, feat2, bb1, proposals2):
    f1, = feat1
    f2, = feat2
    num_images, num_sequences, num_proposals = proposals2.shape[:3]

    # ---- get_modulation (reference frame 0) ----
    feat3_r = jnp.transpose(f1[0], (0, 2, 3, 1))                  # (seq, H, W, Cin)
    c3_r = conv3x3_bn_relu(feat3_r, *params['conv1_r'])           # (seq, H, W, 256)

    bb = bb1[0]                                                   # (seq, 4) x,y,w,h
    bb_xyxy = jnp.concatenate([bb[:, 0:2], bb[:, 0:2] + bb[:, 2:4]], axis=1)
    roi3r = prroi_pool(c3_r, bb_xyxy[:, None, :], 5, 1.0 / 8.0)   # (seq, 1, 25, C)
    w, s, b = params['fc1_r']
    modulation = matmul_affine(roi3r.reshape(num_sequences, -1), w, s, b, relu=True)

    # ---- get_iou_feat ----
    B2 = num_images * num_sequences
    feat_t = jnp.transpose(f2.reshape(B2, *f2.shape[-3:]), (0, 2, 3, 1))
    c1_t = conv3x3_bn_relu(feat_t, *params['conv1_t'])            # (B2, H, W, 256)
    c3_t = conv3x3_bn_relu(c1_t, *params['conv2_t'])              # (B2, H, W, pred)

    # ---- predict_bb_delta ----
    mod_rep = jnp.tile(modulation[None, :, :], (num_images, 1, 1)).reshape(B2, -1)
    proposals = proposals2.reshape(B2, num_proposals, 4)
    prop_xyxy = jnp.concatenate(
        [proposals[..., 0:2], proposals[..., 0:2] + proposals[..., 2:4]], axis=-1)
    roi3t = prroi_pool(c3_t, prop_xyxy, 7, 1.0 / 8.0)             # (B2, P, 49, pred)

    w, s, b = params['fc1_t']
    fc3_t = matmul_affine(roi3t.reshape(B2 * num_proposals, -1), w, s, b, relu=True)

    mod_full = jnp.broadcast_to(
        mod_rep[:, None, :], (B2, num_proposals, mod_rep.shape[-1])
    ).reshape(B2 * num_proposals, -1)

    w_rt, s_rt, b_rt = params['fc1_rt']
    w_bb, b_bb = params['bb_predictor']
    bb_full = fused_head(fc3_t, mod_full, w_rt, s_rt, b_rt, w_bb, b_bb)
    bb_delta = bb_full[:, :4]                                     # drop lane padding

    return bb_delta.reshape(num_images, num_sequences, num_proposals, 4)


if __name__ == "__main__":
    key = jax.random.PRNGKey(0)
    kf1, kf2, kb, kp, kparam = jax.random.split(key, 5)

    num_images, num_sequences, num_proposals = 2, 2, 8
    input_dim, H, W = 64, 16, 16   # 16x16 feature map at stride 8 (128x128 image coords)

    feat1 = (jax.random.normal(kf1, (num_images, num_sequences, input_dim, H, W),
                               dtype=jnp.float32),)
    feat2 = (jax.random.normal(kf2, (num_images, num_sequences, input_dim, H, W),
                               dtype=jnp.float32),)

    xy1 = jax.random.uniform(kb, (num_images, num_sequences, 2), minval=4.0, maxval=80.0)
    wh1 = jax.random.uniform(jax.random.fold_in(kb, 1), (num_images, num_sequences, 2),
                             minval=16.0, maxval=48.0)
    bb1 = jnp.concatenate([xy1, wh1], axis=-1)

    xy2 = jax.random.uniform(kp, (num_images, num_sequences, num_proposals, 2),
                             minval=4.0, maxval=80.0)
    wh2 = jax.random.uniform(jax.random.fold_in(kp, 1),
                             (num_images, num_sequences, num_proposals, 2),
                             minval=16.0, maxval=48.0)
    proposals2 = jnp.concatenate([xy2, wh2], axis=-1)

    params = init_params(kparam, input_dim=input_dim, pred_input_dim=256)

    bb_delta = fpn_bbr_forward(params, feat1, feat2, bb1, proposals2)
    bb_delta = jax.block_until_ready(bb_delta)
    assert bb_delta.shape == (num_images, num_sequences, num_proposals, 4)
    assert bool(jnp.all(jnp.isfinite(bb_delta)))
    print("KERNEL_OK")
</pallas_src>

<mosaic_0001>
module attributes {stable_mosaic.version = 11 : i64} {
  func.func @_conv_mm_kernel(%arg0: i32, %arg1: memref<1x256x576xf32, #tpu.memory_space<vmem>>, %arg2: memref<576x256xbf16, #tpu.memory_space<vmem>>, %arg3: memref<1x256xf32, #tpu.memory_space<vmem>>, %arg4: memref<1x256xf32, #tpu.memory_space<vmem>>, %arg5: memref<1x256x256xf32, #tpu.memory_space<vmem>>) attributes {dimension_semantics = [#tpu.dimension_semantics<parallel>], iteration_bounds = array<i64: 2>, scalar_prefetch = 0 : i64, scratch_operands = 0 : i64, tpu.core_type = #tpu.core_type<tc>, window_params = [{transform_indices = @transform_0, window_bounds = array<i64: 1, 256, 576>}, {pipeline_mode = #tpu.pipeline_mode<synchronous>, transform_indices = @transform_1, window_bounds = array<i64: 576, 256>}, {pipeline_mode = #tpu.pipeline_mode<synchronous>, transform_indices = @transform_2, window_bounds = array<i64: 1, 256>}, {pipeline_mode = #tpu.pipeline_mode<synchronous>, transform_indices = @transform_3, window_bounds = array<i64: 1, 256>}, {transform_indices = @transform_4, window_bounds = array<i64: 1, 256, 256>}]} {
    %c0 = arith.constant 0 : index
    %c0_0 = arith.constant 0 : index
    %c0_1 = arith.constant 0 : index
    %0 = vector.load %arg1[%c0, %c0_0, %c0_1] : memref<1x256x576xf32, #tpu.memory_space<vmem>>, vector<1x256x576xf32>
    %1 = vector.shape_cast %0 : vector<1x256x576xf32> to vector<256x576xf32>
    %2 = arith.truncf %1 : vector<256x576xf32> to vector<256x576xbf16>
    %c0_2 = arith.constant 0 : index
    %c0_3 = arith.constant 0 : index
    %3 = vector.load %arg2[%c0_2, %c0_3] : memref<576x256xbf16, #tpu.memory_space<vmem>>, vector<576x256xbf16>
    %cst = arith.constant dense<0.000000e+00> : vector<256x256xf32>
    %4 = tpu.matmul %2, %3, %cst {dimension_numbers = #tpu.dot_dimension_numbers<[1], [0], [0], [1], [0, 0, 1, 1], [], []>} : vector<256x576xbf16>, vector<576x256xbf16>, vector<256x256xf32> -> vector<256x256xf32>
    %c0_4 = arith.constant 0 : index
    %c0_5 = arith.constant 0 : index
    %5 = vector.load %arg3[%c0_4, %c0_5] : memref<1x256xf32, #tpu.memory_space<vmem>>, vector<1x256xf32>
    %6 = vector.broadcast %5 : vector<1x256xf32> to vector<256x256xf32>
    %7 = arith.mulf %4, %6 : vector<256x256xf32>
    %c0_6 = arith.constant 0 : index
    %c0_7 = arith.constant 0 : index
    %8 = vector.load %arg4[%c0_6, %c0_7] : memref<1x256xf32, #tpu.memory_space<vmem>>, vector<1x256xf32>
    %9 = vector.broadcast %8 : vector<1x256xf32> to vector<256x256xf32>
    %10 = arith.addf %7, %9 : vector<256x256xf32>
    %cst_8 = arith.constant 0.000000e+00 : f32
    %11 = vector.broadcast %cst_8 : f32 to vector<256x256xf32>
    %12 = arith.maximumf %10, %11 : vector<256x256xf32>
    %c0_9 = arith.constant 0 : index
    %c0_10 = arith.constant 0 : index
    %c0_11 = arith.constant 0 : index
    %13 = vector.load %arg5[%c0_9, %c0_10, %c0_11] : memref<1x256x256xf32, #tpu.memory_space<vmem>>, vector<1x256x256xf32>
    %14 = vector.shape_cast %13 : vector<1x256x256xf32> to vector<256x256xf32>
    %15 = vector.shape_cast %12 : vector<256x256xf32> to vector<1x256x256xf32>
    tpu.vector_store %arg5[%c0_9, %c0_10, %c0_11], %15 {strides = array<i32>} : memref<1x256x256xf32, #tpu.memory_space<vmem>>, vector<1x256x256xf32>,
    return
  }
  func.func @transform_0(%arg0: i32) -> (i32, i32, i32) {
    %c0_i32 = arith.constant 0 : i32
    %c0_i32_0 = arith.constant 0 : i32
    %c0_i32_1 = arith.constant 0 : i32
    return %arg0, %c0_i32, %c0_i32_0 : i32, i32, i32
  }
  func.func @transform_1(%arg0: i32) -> (i32, i32) {
    %c0_i32 = arith.constant 0 : i32
    %c0_i32_0 = arith.constant 0 : i32
    %c0_i32_1 = arith.constant 0 : i32
    return %c0_i32, %c0_i32_0 : i32, i32
  }
  func.func @transform_2(%arg0: i32) -> (i32, i32) {
    %c0_i32 = arith.constant 0 : i32
    %c0_i32_0 = arith.constant 0 : i32
    %c0_i32_1 = arith.constant 0 : i32
    return %c0_i32, %c0_i32_0 : i32, i32
  }
  func.func @transform_3(%arg0: i32) -> (i32, i32) {
    %c0_i32 = arith.constant 0 : i32
    %c0_i32_0 = arith.constant 0 : i32
    %c0_i32_1 = arith.constant 0 : i32
    return %c0_i32, %c0_i32_0 : i32, i32
  }
  func.func @transform_4(%arg0: i32) -> (i32, i32, i32) {
    %c0_i32 = arith.constant 0 : i32
    %c0_i32_0 = arith.constant 0 : i32
    %c0_i32_1 = arith.constant 0 : i32
    return %arg0, %c0_i32, %c0_i32_0 : i32, i32, i32
  }
}

</mosaic_0001>

<llo_original>
// kernel: tpu_custom_call.1
$region0: #{tpu_custom_call.1}
  #allocation0 [shape = 'u32[]', space=smem, size = 0x4, offset = 0x4, fixed_abs, tag = 'smem constant byte address 0x4 - core index']
  #allocation1 [shape = 'u32[144,128]{1,0:T(1,128)}', space=vmem, size = 0x12000, scoped, tag = 'internal scratch']
  %s0 = inlined_call_operand.vmem [shape: f32[2,256,576], index: 0, kind: input, shape index: {}]
  %s1 = inlined_call_operand.vmem [shape: bf16[576,256], index: 1, kind: input, shape index: {}]
  %s2 = inlined_call_operand.vmem [shape: f32[1,256], index: 2, kind: input, shape index: {}]
  %s3 = inlined_call_operand.vmem [shape: f32[1,256], index: 3, kind: input, shape index: {}]
  %s4 = inlined_call_operand.hbm [shape: f32[2,256,256], index: 4, kind: output, shape index: {}]
  %s5 = sld [smem:[#allocation0]]
  $region49: #{tpu_custom_call.1} parent=0
    _
  %s7 = ssub.s32 1, %s5
  %s8 = scalar_select 0, %s7, %s5
  $region1: #{tpu_custom_call.1} parent=0
    #allocation2 [shape = 'u8[524288]{0}', space=vmem, size = 0x80000, scoped, tag = 'output window, operand 0']
    #allocation3 [shape = 's32[2]{0}', space=sflag, size = 0x8, scoped, tag = 'scoped memory for tpu_custom_call.1']
    %9 = vsyncpa [#allocation3], 0
    %s10 = scalar_lea.sflag [#allocation3], 1
    %11 = vsyncpa %s10, 0
    loop: start=0, step=1, limit=4
    $region2: #{tpu_custom_call.1} parent=1 // loop_pre_header
      _
    $region3: #{tpu_custom_call.1} parent=1 // loop_header
      %s13 = sphi 0, %s17
      %p14 = scmp.ge.s32.totalorder %s13, 4
      %s23 = sphi 0, %s25
      %s26 = sphi 0, %s23
      %s27 = sphi 0, %s26
      %s43 = sphi 0, %s27
      %s47 = sphi 0, %s47
      %s49 = sphi 0, %s47
      %s50 = sphi 0, %s49
      %s64 = sphi 0, %s50
      %s68 = sphi 0, %s68
      %s70 = sphi 0, %s68
      %s71 = sphi 0, %s70
      %s85 = sphi 0, %s71
      %s89 = sphi 0, %s89
      %s91 = sphi 0, %s89
      %s92 = sphi 0, %s91
      %s106 = sphi 0, %s92
      %s112 = sphi 0, %s114
      %s115 = sphi 0, %s112
      %s116 = sphi 0, %s115
      %s132 = sphi 0, %s116
    $region4: #{tpu_custom_call.1} parent=1 // loop_header_branch
      %16 = sbr.rel (%p14) target = $region8
    $region5: #{tpu_custom_call.1} parent=1 // loop_body
      %s18 = ssub.s32 %s13, 1
      %s19 = ssub.s32 %s13, 2
      %s20 = sadd.s32 %s13, 1
      %s21 = ssub.s32 %s13, %s20
      %p22 = scmp.eq.s32.totalorder %s21, 0
      %s24 = sadd.s32 %s23, 1
      %s25 = scalar_select %p22, %s23, %s24
      %p28 = pneg %p22
      %p29 = scmp.eq.s32.totalorder %s13, 1
      %p30 = por %p28, %p29
      %p31 = scmp.ne.s32.totalorder %s23, %s26
      %p32 = scmp.eq.s32.totalorder %s13, 0
      %p33 = por %p31, %p32
      %p34 = scmp.ne.s32.totalorder %s23, %s26
      %p35 = scmp.eq.s32.totalorder %s18, 1
      %p36 = por %p34, %p35
      %p37 = scmp.ne.s32.totalorder %s26, %s27
      %p38 = scmp.eq.s32.totalorder %s18, 0
      %p39 = por %p37, %p38
      %p40 = scmp.ne.s32.totalorder %s26, %s27
      %p41 = scmp.eq.s32.totalorder %s19, 1
      %p42 = por %p40, %p41
      %p44 = scmp.ne.s32.totalorder %s27, %s43
      %p45 = scmp.eq.s32.totalorder %s19, 0
      %p46 = por %p44, %p45
      %s48 = sadd.s32 %s47, 1
      %p51 = scmp.eq.s32.totalorder %s13, 1
      %p52 = scmp.ne.s32.totalorder %s47, %s49
      %p53 = scmp.eq.s32.totalorder %s13, 0
      %p54 = por %p52, %p53
      %p55 = scmp.ne.s32.totalorder %s47, %s49
      %p56 = scmp.eq.s32.totalorder %s18, 1
      %p57 = por %p55, %p56
      %p58 = scmp.ne.s32.totalorder %s49, %s50
      %p59 = scmp.eq.s32.totalorder %s18, 0
      %p60 = por %p58, %p59
      %p61 = scmp.ne.s32.totalorder %s49, %s50
      %p62 = scmp.eq.s32.totalorder %s19, 1
      %p63 = por %p61, %p62
      %p65 = scmp.ne.s32.totalorder %s50, %s64
      %p66 = scmp.eq.s32.totalorder %s19, 0
      %p67 = por %p65, %p66
      %s69 = sadd.s32 %s68, 1
      %p72 = scmp.eq.s32.totalorder %s13, 1
      %p73 = scmp.ne.s32.totalorder %s68, %s70
      %p74 = scmp.eq.s32.totalorder %s13, 0
      %p75 = por %p73, %p74
      %p76 = scmp.ne.s32.totalorder %s68, %s70
      %p77 = scmp.eq.s32.totalorder %s18, 1
      %p78 = por %p76, %p77
      %p79 = scmp.ne.s32.totalorder %s70, %s71
      %p80 = scmp.eq.s32.totalorder %s18, 0
      %p81 = por %p79, %p80
      %p82 = scmp.ne.s32.totalorder %s70, %s71
      %p83 = scmp.eq.s32.totalorder %s19, 1
      %p84 = por %p82, %p83
      %p86 = scmp.ne.s32.totalorder %s71, %s85
      %p87 = scmp.eq.s32.totalorder %s19, 0
      %p88 = por %p86, %p87
      %s90 = sadd.s32 %s89, 1
      %p93 = scmp.eq.s32.totalorder %s13, 1
      %p94 = scmp.ne.s32.totalorder %s89, %s91
      %p95 = scmp.eq.s32.totalorder %s13, 0
      %p96 = por %p94, %p95
      %p97 = scmp.ne.s32.totalorder %s89, %s91
      %p98 = scmp.eq.s32.totalorder %s18, 1
      %p99 = por %p97, %p98
      %p100 = scmp.ne.s32.totalorder %s91, %s92
      %p101 = scmp.eq.s32.totalorder %s18, 0
      %p102 = por %p100, %p101
      %p103 = scmp.ne.s32.totalorder %s91, %s92
      %p104 = scmp.eq.s32.totalorder %s19, 1
      %p105 = por %p103, %p104
      %p107 = scmp.ne.s32.totalorder %s92, %s106
      %p108 = scmp.eq.s32.totalorder %s19, 0
      %p109 = por %p107, %p108
      %s110 = ssub.s32 %s13, %s20
      %p111 = scmp.eq.s32.totalorder %s110, 0
      %s113 = sadd.s32 %s112, 1
      %s114 = scalar_select %p111, %s112, %s113
      %p117 = pneg %p111
      %p118 = scmp.eq.s32.totalorder %s13, 1
      %p119 = por %p117, %p118
      %p120 = scmp.ne.s32.totalorder %s112, %s115
      %p121 = scmp.eq.s32.totalorder %s13, 0
      %p122 = por %p120, %p121
      %p123 = scmp.ne.s32.totalorder %s112, %s115
      %p124 = scmp.eq.s32.totalorder %s18, 1
      %p125 = por %p123, %p124
      %p126 = scmp.ne.s32.totalorder %s115, %s116
      %p127 = scmp.eq.s32.totalorder %s18, 0
      %p128 = por %p126, %p127
      %p129 = scmp.ne.s32.totalorder %s115, %s116
      %p130 = scmp.eq.s32.totalorder %s19, 1
      %p131 = por %p129, %p130
      %p133 = scmp.ne.s32.totalorder %s116, %s132
      %p134 = scmp.eq.s32.totalorder %s19, 0
      %p135 = por %p133, %p134
      %p136 = scmp.le.s32.totalorder 1, %s13
      %p137 = scmp.lt.s32.totalorder %s13, 3
      %p138 = pnand %p136, %p137
      %p139 = pneg %p138
      // Predicated region
      $region9: #{tpu_custom_call.1} parent=5 // pred_check
        _
      $region10: #{tpu_custom_call.1} parent=5 // pred_check_branch
        %141 = sbr.rel (%p138) target = $region12
      $region11: #{tpu_custom_call.1} parent=5 // pred_region
        %s142 = ssub.s32 %s13, 1
        // Predicated region
        $region13: #{tpu_custom_call.1} parent=11 // pred_check
          %p143 = pneg %p60
        $region14: #{tpu_custom_call.1} parent=11 // pred_check_branch
          %145 = sbr.rel (%p143) target = $region16
        $region15: #{tpu_custom_call.1} parent=11 // pred_region
          _
        $region16: #{tpu_custom_call.1} parent=11 // pred_fallthru
          _
        // Predicated region
        $region17: #{tpu_custom_call.1} parent=11 // pred_check
          %p146 = pneg %p81
        $region18: #{tpu_custom_call.1} parent=11 // pred_check_branch
          %148 = sbr.rel (%p146) target = $region20
        $region19: #{tpu_custom_call.1} parent=11 // pred_region
          _
        $region20: #{tpu_custom_call.1} parent=11 // pred_fallthru
          _
        // Predicated region
        $region21: #{tpu_custom_call.1} parent=11 // pred_check
          %p149 = pneg %p102
        $region22: #{tpu_custom_call.1} parent=11 // pred_check_branch
          %151 = sbr.rel (%p149) target = $region24
        $region23: #{tpu_custom_call.1} parent=11 // pred_region
          _
        $region24: #{tpu_custom_call.1} parent=11 // pred_fallthru
          _
      $region12: #{tpu_custom_call.1} parent=5 // pred_fallthru
        _
      %p152 = scmp.lt.s32.totalorder %s13, 2
      // Predicated region
      $region25: #{tpu_custom_call.1} parent=5 // pred_check
        %p153 = pneg %p152
      $region26: #{tpu_custom_call.1} parent=5 // pred_check_branch
        %155 = sbr.rel (%p153) target = $region28
      $region27: #{tpu_custom_call.1} parent=5 // pred_region
        // Predicated region
        $region29: #{tpu_custom_call.1} parent=27 // pred_check
          %p156 = pneg %p33
        $region30: #{tpu_custom_call.1} parent=27 // pred_check_branch
          %158 = sbr.rel (%p156) target = $region32
        $region31: #{tpu_custom_call.1} parent=27 // pred_region
          %p159 = scmp.lt.s32.totalorder %s13, 1
          %s160 = scalar_select %p159, %s13, 1
          %s161 = smul.addr %s160, 160
          %s162 = smul.addr %s161, 8
          %s163 = scalar_lea.vmem %s0, %s162
        $region32: #{tpu_custom_call.1} parent=27 // pred_fallthru
          _
      $region28: #{tpu_custom_call.1} parent=5 // pred_fallthru
        _
      %p164 = scmp.le.s32.totalorder 1, %s13
      %p165 = scmp.lt.s32.totalorder %s13, 3
      %p166 = pnand %p164, %p165
      %p167 = pneg %p166
      // Predicated region
      $region33: #{tpu_custom_call.1} parent=5 // pred_check
        _
      $region34: #{tpu_custom_call.1} parent=5 // pred_check_branch
        %169 = sbr.rel (%p166) target = $region36
      $region35: #{tpu_custom_call.1} parent=5 // pred_region
        %s170 = ssub.s32 %s13, 1
        %p171 = scmp.lt.s32.totalorder %s18, 1
        %s172 = scalar_select %p171, %s18, 1
        %s173 = smul.addr %s172, 160
        %s174 = smul.addr %s173, 8
        %s175 = scalar_lea.vmem %s0, %s174
        %p176 = pneg %p39
        %p177 = pneg %p36
        %p178 = pneg %p60
        %p179 = pneg %p57
        %p180 = pneg %p81
        %p181 = pneg %p78
        %p182 = pneg %p102
        %p183 = pneg %p99
        %p184 = pneg %p128
        %p185 = pneg %p125
        %s186 = sand.u32 %s115, 1
        %s187 = scalar_lea.sflag [#allocation3], %s186
        %s188 = sand.u32 %s115, 1
        %s189 = smul.addr %s188, 512
        %s190 = scalar_lea.vmem [#allocation2], %s189
        %p191 = scmp.lt.s32.totalorder %s18, 1
        %s192 = scalar_select %p191, %s18, 1
        %s193 = smul.addr %s192, 160
        %s194 = smul.addr %s193, 8
        %s195 = scalar_lea.vmem %s0, %s194
        %v197 = vld [vmem:[%s195] sm:$0xff]
        %v198 = vld [vmem:[%s195 + $0x8] sm:$0xff]
        %v199 = vld [vmem:[%s195 + $0x10] sm:$0xff]
        %v200 = vld [vmem:[%s195 + $0x18] sm:$0xff]
        %v201 = vld [vmem:[%s195 + $0x20] sm:$0xff]
        %v202 = vld [vmem:[%s195 + $0x28] sm:$0xff]
        %v203 = vld [vmem:[%s195 + $0x30] sm:$0xff]
        %v204 = vld [vmem:[%s195 + $0x38] sm:$0xff]
        %v205 = vld [vmem:[%s195 + $0x40] sm:$0xff]
        %v206 = vld [vmem:[%s195 + $0x48] sm:$0xff]
        %v207 = vld [vmem:[%s195 + $0x50] sm:$0xff]
        %v208 = vld [vmem:[%s195 + $0x58] sm:$0xff]
        %v209 = vld [vmem:[%s195 + $0x60] sm:$0xff]
        %v210 = vld [vmem:[%s195 + $0x68] sm:$0xff]
        %v211 = vld [vmem:[%s195 + $0x70] sm:$0xff]
        %v212 = vld [vmem:[%s195 + $0x78] sm:$0xff]
        %v213 = vld [vmem:[%s195 + $0x80] sm:$0xff]
        %v214 = vld [vmem:[%s195 + $0x88] sm:$0xff]
        %v215 = vld [vmem:[%s195 + $0x90] sm:$0xff]
        %v216 = vld [vmem:[%s195 + $0x98] sm:$0xff]
        %v217 = vld [vmem:[%s195 + $0xa0] sm:$0xff]
        %v218 = vld [vmem:[%s195 + $0xa8] sm:$0xff]
        %v219 = vld [vmem:[%s195 + $0xb0] sm:$0xff]
        %v220 = vld [vmem:[%s195 + $0xb8] sm:$0xff]
        %v221 = vld [vmem:[%s195 + $0xc0] sm:$0xff]
        %v222 = vld [vmem:[%s195 + $0xc8] sm:$0xff]
        %v223 = vld [vmem:[%s195 + $0xd0] sm:$0xff]
        %v224 = vld [vmem:[%s195 + $0xd8] sm:$0xff]
        %v225 = vld [vmem:[%s195 + $0xe0] sm:$0xff]
        %v226 = vld [vmem:[%s195 + $0xe8] sm:$0xff]
        %v227 = vld [vmem:[%s195 + $0xf0] sm:$0xff]
        %v228 = vld [vmem:[%s195 + $0xf8] sm:$0xff]
        %v229 = vld [vmem:[%s195 + $0x100] sm:$0xff]
        %v230 = vld [vmem:[%s195 + $0x108] sm:$0xff]
        %v231 = vld [vmem:[%s195 + $0x110] sm:$0xff]
        %v232 = vld [vmem:[%s195 + $0x118] sm:$0xff]
        %v233 = vld [vmem:[%s195 + $0x120] sm:$0xff]
        %v234 = vld [vmem:[%s195 + $0x128] sm:$0xff]
        %v235 = vld [vmem:[%s195 + $0x130] sm:$0xff]
        %v236 = vld [vmem:[%s195 + $0x138] sm:$0xff]
        %v237 = vld [vmem:[%s195 + $0x140] sm:$0xff]
        %v238 = vld [vmem:[%s195 + $0x148] sm:$0xff]
        %v239 = vld [vmem:[%s195 + $0x150] sm:$0xff]
        %v240 = vld [vmem:[%s195 + $0x158] sm:$0xff]
        %v241 = vld [vmem:[%s195 + $0x160] sm:$0xff]
        %v242 = vld [vmem:[%s195 + $0x168] sm:$0xff]
        %v243 = vld [vmem:[%s195 + $0x170] sm:$0xff]
        %v244 = vld [vmem:[%s195 + $0x178] sm:$0xff]
        %v245 = vld [vmem:[%s195 + $0x180] sm:$0xff]
        %v246 = vld [vmem:[%s195 + $0x188] sm:$0xff]
        %v247 = vld [vmem:[%s195 + $0x190] sm:$0xff]
        %v248 = vld [vmem:[%s195 + $0x198] sm:$0xff]
        %v249 = vld [vmem:[%s195 + $0x1a0] sm:$0xff]
        %v250 = vld [vmem:[%s195 + $0x1a8] sm:$0xff]
        %v251 = vld [vmem:[%s195 + $0x1b0] sm:$0xff]
        %v252 = vld [vmem:[%s195 + $0x1b8] sm:$0xff]
        %v253 = vld [vmem:[%s195 + $0x1c0] sm:$0xff]
        %v254 = vld [vmem:[%s195 + $0x1c8] sm:$0xff]
        %v255 = vld [vmem:[%s195 + $0x1d0] sm:$0xff]
        %v256 = vld [vmem:[%s195 + $0x1d8] sm:$0xff]
        %v257 = vld [vmem:[%s195 + $0x1e0] sm:$0xff]
        %v258 = vld [vmem:[%s195 + $0x1e8] sm:$0xff]
        %v259 = vld [vmem:[%s195 + $0x1f0] sm:$0xff]
        %v260 = vld [vmem:[%s195 + $0x1f8] sm:$0xff]
        %v261 = vld [vmem:[%s195 + $0x200] sm:$0xff]
        %v262 = vld [vmem:[%s195 + $0x208] sm:$0xff]
        %v263 = vld [vmem:[%s195 + $0x210] sm:$0xff]
        %v264 = vld [vmem:[%s195 + $0x218] sm:$0xff]
        %v265 = vld [vmem:[%s195 + $0x220] sm:$0xff]
        %v266 = vld [vmem:[%s195 + $0x228] sm:$0xff]
        %v267 = vld [vmem:[%s195 + $0x230] sm:$0xff]
        %v268 = vld [vmem:[%s195 + $0x238] sm:$0xff]
        %v269 = vld [vmem:[%s195 + $0x240] sm:$0xff]
        %v270 = vld [vmem:[%s195 + $0x248] sm:$0xff]
        %v271 = vld [vmem:[%s195 + $0x250] sm:$0xff]
        %v272 = vld [vmem:[%s195 + $0x258] sm:$0xff]
        %v273 = vld [vmem:[%s195 + $0x260] sm:$0xff]
        %v274 = vld [vmem:[%s195 + $0x268] sm:$0xff]
        %v275 = vld [vmem:[%s195 + $0x270] sm:$0xff]
        %v276 = vld [vmem:[%s195 + $0x278] sm:$0xff]
        %v277 = vld [vmem:[%s195 + $0x280] sm:$0xff]
        %v278 = vld [vmem:[%s195 + $0x288] sm:$0xff]
        %v279 = vld [vmem:[%s195 + $0x290] sm:$0xff]
        %v280 = vld [vmem:[%s195 + $0x298] sm:$0xff]
        %v281 = vld [vmem:[%s195 + $0x2a0] sm:$0xff]
        %v282 = vld [vmem:[%s195 + $0x2a8] sm:$0xff]
        %v283 = vld [vmem:[%s195 + $0x2b0] sm:$0xff]
        %v284 = vld [vmem:[%s195 + $0x2b8] sm:$0xff]
        %v285 = vld [vmem:[%s195 + $0x2c0] sm:$0xff]
        %v286 = vld [vmem:[%s195 + $0x2c8] sm:$0xff]
        %v287 = vld [vmem:[%s195 + $0x2d0] sm:$0xff]
        %v288 = vld [vmem:[%s195 + $0x2d8] sm:$0xff]
        %v289 = vld [vmem:[%s195 + $0x2e0] sm:$0xff]
        %v290 = vld [vmem:[%s195 + $0x2e8] sm:$0xff]
        %v291 = vld [vmem:[%s195 + $0x2f0] sm:$0xff]
        %v292 = vld [vmem:[%s195 + $0x2f8] sm:$0xff]
        %v293 = vld [vmem:[%s195 + $0x300] sm:$0xff]
        %v294 = vld [vmem:[%s195 + $0x308] sm:$0xff]
        %v295 = vld [vmem:[%s195 + $0x310] sm:$0xff]
        %v296 = vld [vmem:[%s195 + $0x318] sm:$0xff]
        %v297 = vld [vmem:[%s195 + $0x320] sm:$0xff]
        %v298 = vld [vmem:[%s195 + $0x328] sm:$0xff]
        %v299 = vld [vmem:[%s195 + $0x330] sm:$0xff]
        %v300 = vld [vmem:[%s195 + $0x338] sm:$0xff]
        %v301 = vld [vmem:[%s195 + $0x340] sm:$0xff]
        %v302 = vld [vmem:[%s195 + $0x348] sm:$0xff]
        %v303 = vld [vmem:[%s195 + $0x350] sm:$0xff]
        %v304 = vld [vmem:[%s195 + $0x358] sm:$0xff]
        %v305 = vld [vmem:[%s195 + $0x360] sm:$0xff]
        %v306 = vld [vmem:[%s195 + $0x368] sm:$0xff]
        %v307 = vld [vmem:[%s195 + $0x370] sm:$0xff]
        %v308 = vld [vmem:[%s195 + $0x378] sm:$0xff]
        %v309 = vld [vmem:[%s195 + $0x380] sm:$0xff]
        %v310 = vld [vmem:[%s195 + $0x388] sm:$0xff]
        %v311 = vld [vmem:[%s195 + $0x390] sm:$0xff]
        %v312 = vld [vmem:[%s195 + $0x398] sm:$0xff]
        %v313 = vld [vmem:[%s195 + $0x3a0] sm:$0xff]
        %v314 = vld [vmem:[%s195 + $0x3a8] sm:$0xff]
        %v315 = vld [vmem:[%s195 + $0x3b0] sm:$0xff]
        %v316 = vld [vmem:[%s195 + $0x3b8] sm:$0xff]
        %v317 = vld [vmem:[%s195 + $0x3c0] sm:$0xff]
        %v318 = vld [vmem:[%s195 + $0x3c8] sm:$0xff]
        %v319 = vld [vmem:[%s195 + $0x3d0] sm:$0xff]
        %v320 = vld [vmem:[%s195 + $0x3d8] sm:$0xff]
        %v321 = vld [vmem:[%s195 + $0x3e0] sm:$0xff]
        %v322 = vld [vmem:[%s195 + $0x3e8] sm:$0xff]
        %v323 = vld [vmem:[%s195 + $0x3f0] sm:$0xff]
        %v324 = vld [vmem:[%s195 + $0x3f8] sm:$0xff]
        %v325 = vld [vmem:[%s195 + $0x400] sm:$0xff]
        %v326 = vld [vmem:[%s195 + $0x408] sm:$0xff]
        %v327 = vld [vmem:[%s195 + $0x410] sm:$0xff]
        %v328 = vld [vmem:[%s195 + $0x418] sm:$0xff]
        %v329 = vld [vmem:[%s195 + $0x420] sm:$0xff]
        %v330 = vld [vmem:[%s195 + $0x428] sm:$0xff]
        %v331 = vld [vmem:[%s195 + $0x430] sm:$0xff]
        %v332 = vld [vmem:[%s195 + $0x438] sm:$0xff]
        %v333 = vld [vmem:[%s195 + $0x440] sm:$0xff]
        %v334 = vld [vmem:[%s195 + $0x448] sm:$0xff]
        %v335 = vld [vmem:[%s195 + $0x450] sm:$0xff]
        %v336 = vld [vmem:[%s195 + $0x458] sm:$0xff]
        %v337 = vld [vmem:[%s195 + $0x460] sm:$0xff]
        %v338 = vld [vmem:[%s195 + $0x468] sm:$0xff]
        %v339 = vld [vmem:[%s195 + $0x470] sm:$0xff]
        %v340 = vld [vmem:[%s195 + $0x478] sm:$0xff]
        %v341 = vld [vmem:[%s195 + $0x480] sm:$0xff]
        %v342 = vld [vmem:[%s195 + $0x488] sm:$0xff]
        %v343 = vld [vmem:[%s195 + $0x490] sm:$0xff]
        %v344 = vld [vmem:[%s195 + $0x498] sm:$0xff]
        %v345 = vld [vmem:[%s195 + $0x4a0] sm:$0xff]
        %v346 = vld [vmem:[%s195 + $0x4a8] sm:$0xff]
        %v347 = vld [vmem:[%s195 + $0x4b0] sm:$0xff]
        %v348 = vld [vmem:[%s195 + $0x4b8] sm:$0xff]
        %v349 = vld [vmem:[%s195 + $0x4c0] sm:$0xff]
        %v350 = vld [vmem:[%s195 + $0x4c8] sm:$0xff]
        %v351 = vld [vmem:[%s195 + $0x4d0] sm:$0xff]
        %v352 = vld [vmem:[%s195 + $0x4d8] sm:$0xff]
        %v353 = vld [vmem:[%s195 + $0x4e0] sm:$0xff]
        %v354 = vld [vmem:[%s195 + $0x4e8] sm:$0xff]
        %v355 = vld [vmem:[%s195 + $0x4f0] sm:$0xff]
        %v356 = vld [vmem:[%s195 + $0x4f8] sm:$0xff]
        %v357 = vpack.c.bf16 %v202, %v197
        %v358 = vpack.c.bf16 %v203, %v198
        %v359 = vpack.c.bf16 %v204, %v199
        %v360 = vpack.c.bf16 %v205, %v200
        %v361 = vpack.c.bf16 %v206, %v201
        %v362 = vpack.c.bf16 %v212, %v207
        %v363 = vpack.c.bf16 %v213, %v208
        %v364 = vpack.c.bf16 %v214, %v209
        %v365 = vpack.c.bf16 %v215, %v210
        %v366 = vpack.c.bf16 %v216, %v211
        %v367 = vpack.c.bf16 %v222, %v217
        %v368 = vpack.c.bf16 %v223, %v218
        %v369 = vpack.c.bf16 %v224, %v219
        %v370 = vpack.c.bf16 %v225, %v220
        %v371 = vpack.c.bf16 %v226, %v221
        %v372 = vpack.c.bf16 %v232, %v227
        %v373 = vpack.c.bf16 %v233, %v228
        %v374 = vpack.c.bf16 %v234, %v229
        %v375 = vpack.c.bf16 %v235, %v230
        %v376 = vpack.c.bf16 %v236, %v231
        %v377 = vpack.c.bf16 %v242, %v237
        %v378 = vpack.c.bf16 %v243, %v238
        %v379 = vpack.c.bf16 %v244, %v239
        %v380 = vpack.c.bf16 %v245, %v240
        %v381 = vpack.c.bf16 %v246, %v241
        %v382 = vpack.c.bf16 %v252, %v247
        %v383 = vpack.c.bf16 %v253, %v248
        %v384 = vpack.c.bf16 %v254, %v249
        %v385 = vpack.c.bf16 %v255, %v250
        %v386 = vpack.c.bf16 %v256, %v251
        %v387 = vpack.c.bf16 %v262, %v257
        %v388 = vpack.c.bf16 %v263, %v258
        %v389 = vpack.c.bf16 %v264, %v259
        %v390 = vpack.c.bf16 %v265, %v260
        %v391 = vpack.c.bf16 %v266, %v261
        %v392 = vpack.c.bf16 %v272, %v267
        %v393 = vpack.c.bf16 %v273, %v268
        %v394 = vpack.c.bf16 %v274, %v269
        %v395 = vpack.c.bf16 %v275, %v270
        %v396 = vpack.c.bf16 %v276, %v271
        %v397 = vpack.c.bf16 %v282, %v277
        %v398 = vpack.c.bf16 %v283, %v278
        %v399 = vpack.c.bf16 %v284, %v279
        %v400 = vpack.c.bf16 %v285, %v280
        %v401 = vpack.c.bf16 %v286, %v281
        %v402 = vpack.c.bf16 %v292, %v287
        %v403 = vpack.c.bf16 %v293, %v288
        %v404 = vpack.c.bf16 %v294, %v289
        %v405 = vpack.c.bf16 %v295, %v290
        %v406 = vpack.c.bf16 %v296, %v291
        %v407 = vpack.c.bf16 %v302, %v297
        %v408 = vpack.c.bf16 %v303, %v298
        %v409 = vpack.c.bf16 %v304, %v299
        %v410 = vpack.c.bf16 %v305, %v300
        %v411 = vpack.c.bf16 %v306, %v301
        %v412 = vpack.c.bf16 %v312, %v307
        %v413 = vpack.c.bf16 %v313, %v308
        %v414 = vpack.c.bf16 %v314, %v309
        %v415 = vpack.c.bf16 %v315, %v310
        %v416 = vpack.c.bf16 %v316, %v311
        %v417 = vpack.c.bf16 %v322, %v317
        %v418 = vpack.c.bf16 %v323, %v318
        %v419 = vpack.c.bf16 %v324, %v319
        %v420 = vpack.c.bf16 %v325, %v320
        %v421 = vpack.c.bf16 %v326, %v321
        %v422 = vpack.c.bf16 %v332, %v327
        %v423 = vpack.c.bf16 %v333, %v328
        %v424 = vpack.c.bf16 %v334, %v329
        %v425 = vpack.c.bf16 %v335, %v330
        %v426 = vpack.c.bf16 %v336, %v331
        %v427 = vpack.c.bf16 %v342, %v337
        %v428 = vpack.c.bf16 %v343, %v338
        %v429 = vpack.c.bf16 %v344, %v339
        %v430 = vpack.c.bf16 %v345, %v340
        %v431 = vpack.c.bf16 %v346, %v341
        %v432 = vpack.c.bf16 %v352, %v347
        %v433 = vpack.c.bf16 %v353, %v348
        %v434 = vpack.c.bf16 %v354, %v349
        %v435 = vpack.c.bf16 %v355, %v350
        %v436 = vpack.c.bf16 %v356, %v351
        %v437 = vld [vmem:[%s1] sm:$0xff]
        %v438 = vld [vmem:[%s1 + $0x8] sm:$0xff]
        %v439 = vld [vmem:[%s1 + $0x10] sm:$0xff]
        %v440 = vld [vmem:[%s1 + $0x18] sm:$0xff]
        %v441 = vld [vmem:[%s1 + $0x20] sm:$0xff]
        %v442 = vld [vmem:[%s1 + $0x28] sm:$0xff]
        %v443 = vld [vmem:[%s1 + $0x30] sm:$0xff]
        %v444 = vld [vmem:[%s1 + $0x38] sm:$0xff]
        %v445 = vld [vmem:[%s1 + $0x40] sm:$0xff]
        %v446 = vld [vmem:[%s1 + $0x48] sm:$0xff]
        %v447 = vld [vmem:[%s1 + $0x50] sm:$0xff]
        %v448 = vld [vmem:[%s1 + $0x58] sm:$0xff]
        %v449 = vld [vmem:[%s1 + $0x60] sm:$0xff]
        %v450 = vld [vmem:[%s1 + $0x68] sm:$0xff]
        %v451 = vld [vmem:[%s1 + $0x70] sm:$0xff]
        %v452 = vld [vmem:[%s1 + $0x78] sm:$0xff]
        %v453 = vld [vmem:[%s1 + $0x80] sm:$0xff]
        %v454 = vld [vmem:[%s1 + $0x88] sm:$0xff]
        %v455 = vld [vmem:[%s1 + $0x90] sm:$0xff]
        %v456 = vld [vmem:[%s1 + $0x98] sm:$0xff]
        %v457 = vld [vmem:[%s1 + $0xa0] sm:$0xff]
        %v458 = vld [vmem:[%s1 + $0xa8] sm:$0xff]
        %v459 = vld [vmem:[%s1 + $0xb0] sm:$0xff]
        %v460 = vld [vmem:[%s1 + $0xb8] sm:$0xff]
        %v461 = vld [vmem:[%s1 + $0xc0] sm:$0xff]
        %v462 = vld [vmem:[%s1 + $0xc8] sm:$0xff]
        %v463 = vld [vmem:[%s1 + $0xd0] sm:$0xff]
        %v464 = vld [vmem:[%s1 + $0xd8] sm:$0xff]
        %v465 = vld [vmem:[%s1 + $0xe0] sm:$0xff]
        %v466 = vld [vmem:[%s1 + $0xe8] sm:$0xff]
        %v467 = vld [vmem:[%s1 + $0xf0] sm:$0xff]
        %v468 = vld [vmem:[%s1 + $0xf8] sm:$0xff]
        %v469 = vld [vmem:[%s1 + $0x100] sm:$0xff]
        %v470 = vld [vmem:[%s1 + $0x108] sm:$0xff]
        %v471 = vld [vmem:[%s1 + $0x110] sm:$0xff]
        %v472 = vld [vmem:[%s1 + $0x118] sm:$0xff]
        %v473 = vld [vmem:[%s1 + $0x120] sm:$0xff]
        %v474 = vld [vmem:[%s1 + $0x128] sm:$0xff]
        %v475 = vld [vmem:[%s1 + $0x130] sm:$0xff]
        %v476 = vld [vmem:[%s1 + $0x138] sm:$0xff]
        %v477 = vld [vmem:[%s1 + $0x140] sm:$0xff]
        %v478 = vld [vmem:[%s1 + $0x148] sm:$0xff]
        %v479 = vld [vmem:[%s1 + $0x150] sm:$0xff]
        %v480 = vld [vmem:[%s1 + $0x158] sm:$0xff]
        %v481 = vld [vmem:[%s1 + $0x160] sm:$0xff]
        %v482 = vld [vmem:[%s1 + $0x168] sm:$0xff]
        %v483 = vld [vmem:[%s1 + $0x170] sm:$0xff]
        %v484 = vld [vmem:[%s1 + $0x178] sm:$0xff]
        %v485 = vld [vmem:[%s1 + $0x180] sm:$0xff]
        %v486 = vld [vmem:[%s1 + $0x188] sm:$0xff]
        %v487 = vld [vmem:[%s1 + $0x190] sm:$0xff]
        %v488 = vld [vmem:[%s1 + $0x198] sm:$0xff]
        %v489 = vld [vmem:[%s1 + $0x1a0] sm:$0xff]
        %v490 = vld [vmem:[%s1 + $0x1a8] sm:$0xff]
        %v491 = vld [vmem:[%s1 + $0x1b0] sm:$0xff]
        %v492 = vld [vmem:[%s1 + $0x1b8] sm:$0xff]
        %v493 = vld [vmem:[%s1 + $0x1c0] sm:$0xff]
        %v494 = vld [vmem:[%s1 + $0x1c8] sm:$0xff]
        %v495 = vld [vmem:[%s1 + $0x1d0] sm:$0xff]
        %v496 = vld [vmem:[%s1 + $0x1d8] sm:$0xff]
        %v497 = vld [vmem:[%s1 + $0x1e0] sm:$0xff]
        %v498 = vld [vmem:[%s1 + $0x1e8] sm:$0xff]
        %v499 = vld [vmem:[%s1 + $0x1f0] sm:$0xff]
        %v500 = vld [vmem:[%s1 + $0x1f8] sm:$0xff]
        %v501 = vld [vmem:[%s1 + $0x200] sm:$0xff]
        %v502 = vld [vmem:[%s1 + $0x208] sm:$0xff]
        %v503 = vld [vmem:[%s1 + $0x210] sm:$0xff]
        %v504 = vld [vmem:[%s1 + $0x218] sm:$0xff]
        %v505 = vld [vmem:[%s1 + $0x220] sm:$0xff]
        %v506 = vld [vmem:[%s1 + $0x228] sm:$0xff]
        %v507 = vld [vmem:[%s1 + $0x230] sm:$0xff]
        %v508 = vld [vmem:[%s1 + $0x238] sm:$0xff]
        %v581 = vunpack.c.l.b16 %v437
        %v582 = vunpack.c.h.b16 %v437
        %v583 = vunpack.c.l.b16 %v438
        %v584 = vunpack.c.h.b16 %v438
        %v585 = vunpack.c.l.b16 %v439
        %v586 = vunpack.c.h.b16 %v439
        %v587 = vunpack.c.l.b16 %v440
        %v588 = vunpack.c.h.b16 %v440
        %v589 = vunpack.c.l.b16 %v441
        %v590 = vunpack.c.h.b16 %v441
        %v591 = vunpack.c.l.b16 %v442
        %v592 = vunpack.c.h.b16 %v442
        %v593 = vunpack.c.l.b16 %v443
        %v594 = vunpack.c.h.b16 %v443
        %v595 = vunpack.c.l.b16 %v444
        %v596 = vunpack.c.h.b16 %v444
        %v597 = vunpack.c.l.b16 %v445
        %v598 = vunpack.c.h.b16 %v445
        %v599 = vunpack.c.l.b16 %v446
        %v600 = vunpack.c.h.b16 %v446
        %v601 = vunpack.c.l.b16 %v447
        %v602 = vunpack.c.h.b16 %v447
        %v603 = vunpack.c.l.b16 %v448
        %v604 = vunpack.c.h.b16 %v448
        %v605 = vunpack.c.l.b16 %v449
        %v606 = vunpack.c.h.b16 %v449
        %v607 = vunpack.c.l.b16 %v450
        %v608 = vunpack.c.h.b16 %v450
        %v609 = vunpack.c.l.b16 %v451
        %v610 = vunpack.c.h.b16 %v451
        %v611 = vunpack.c.l.b16 %v452
        %v612 = vunpack.c.h.b16 %v452
        %v613 = vunpack.c.l.b16 %v453
        %v614 = vunpack.c.h.b16 %v453
        %v615 = vunpack.c.l.b16 %v454
        %v616 = vunpack.c.h.b16 %v454
        %v617 = vunpack.c.l.b16 %v455
        %v618 = vunpack.c.h.b16 %v455
        %v619 = vunpack.c.l.b16 %v456
        %v620 = vunpack.c.h.b16 %v456
        %v621 = vunpack.c.l.b16 %v457
        %v622 = vunpack.c.h.b16 %v457
        %v623 = vunpack.c.l.b16 %v458
        %v624 = vunpack.c.h.b16 %v458
        %v625 = vunpack.c.l.b16 %v459
        %v626 = vunpack.c.h.b16 %v459
        %v627 = vunpack.c.l.b16 %v460
        %v628 = vunpack.c.h.b16 %v460
        %v629 = vunpack.c.l.b16 %v461
        %v630 = vunpack.c.h.b16 %v461
        %v631 = vunpack.c.l.b16 %v462
        %v632 = vunpack.c.h.b16 %v462
        %v633 = vunpack.c.l.b16 %v463
        %v634 = vunpack.c.h.b16 %v463
        %v635 = vunpack.c.l.b16 %v464
        %v636 = vunpack.c.h.b16 %v464
        %v637 = vunpack.c.l.b16 %v465
        %v638 = vunpack.c.h.b16 %v465
        %v639 = vunpack.c.l.b16 %v466
        %v640 = vunpack.c.h.b16 %v466
        %v641 = vunpack.c.l.b16 %v467
        %v642 = vunpack.c.h.b16 %v467
        %v643 = vunpack.c.l.b16 %v468
        %v644 = vunpack.c.h.b16 %v468
        %v645 = vunpack.c.l.b16 %v469
        %v646 = vunpack.c.h.b16 %v469
        %v647 = vunpack.c.l.b16 %v470
        %v648 = vunpack.c.h.b16 %v470
        %v649 = vunpack.c.l.b16 %v471
        %v650 = vunpack.c.h.b16 %v471
        %v651 = vunpack.c.l.b16 %v472
        %v652 = vunpack.c.h.b16 %v472
        %v653 = vunpack.c.l.b16 %v473
        %v654 = vunpack.c.h.b16 %v473
        %v655 = vunpack.c.l.b16 %v474
        %v656 = vunpack.c.h.b16 %v474
        %v657 = vunpack.c.l.b16 %v475
        %v658 = vunpack.c.h.b16 %v475
        %v659 = vunpack.c.l.b16 %v476
        %v660 = vunpack.c.h.b16 %v476
        %v661 = vunpack.c.l.b16 %v477
        %v662 = vunpack.c.h.b16 %v477
        %v663 = vunpack.c.l.b16 %v478
        %v664 = vunpack.c.h.b16 %v478
        %v665 = vunpack.c.l.b16 %v479
        %v666 = vunpack.c.h.b16 %v479
        %v667 = vunpack.c.l.b16 %v480
        %v668 = vunpack.c.h.b16 %v480
        %v669 = vunpack.c.l.b16 %v481
        %v670 = vunpack.c.h.b16 %v481
        %v671 = vunpack.c.l.b16 %v482
        %v672 = vunpack.c.h.b16 %v482
        %v673 = vunpack.c.l.b16 %v483
        %v674 = vunpack.c.h.b16 %v483
        %v675 = vunpack.c.l.b16 %v484
        %v676 = vunpack.c.h.b16 %v484
        %v677 = vunpack.c.l.b16 %v485
        %v678 = vunpack.c.h.b16 %v485
        %v679 = vunpack.c.l.b16 %v486
        %v680 = vunpack.c.h.b16 %v486
        %v681 = vunpack.c.l.b16 %v487
        %v682 = vunpack.c.h.b16 %v487
        %v683 = vunpack.c.l.b16 %v488
        %v684 = vunpack.c.h.b16 %v488
        %v685 = vunpack.c.l.b16 %v489
        %v686 = vunpack.c.h.b16 %v489
        %v687 = vunpack.c.l.b16 %v490
        %v688 = vunpack.c.h.b16 %v490
        %v689 = vunpack.c.l.b16 %v491
        %v690 = vunpack.c.h.b16 %v491
        %v691 = vunpack.c.l.b16 %v492
        %v692 = vunpack.c.h.b16 %v492
        %v693 = vunpack.c.l.b16 %v493
        %v694 = vunpack.c.h.b16 %v493
        %v695 = vunpack.c.l.b16 %v494
        %v696 = vunpack.c.h.b16 %v494
        %v697 = vunpack.c.l.b16 %v495
        %v698 = vunpack.c.h.b16 %v495
        %v699 = vunpack.c.l.b16 %v496
        %v700 = vunpack.c.h.b16 %v496
        %v701 = vunpack.c.l.b16 %v497
        %v702 = vunpack.c.h.b16 %v497
        %v703 = vunpack.c.l.b16 %v498
        %v704 = vunpack.c.h.b16 %v498
        %v705 = vunpack.c.l.b16 %v499
        %v706 = vunpack.c.h.b16 %v499
        %v707 = vunpack.c.l.b16 %v500
        %v708 = vunpack.c.h.b16 %v500
        %v709 = vunpack.c.l.b16 %v501
        %v710 = vunpack.c.h.b16 %v501
        %v711 = vunpack.c.l.b16 %v502
        %v712 = vunpack.c.h.b16 %v502
        %v713 = vunpack.c.l.b16 %v503
        %v714 = vunpack.c.h.b16 %v503
        %v715 = vunpack.c.l.b16 %v504
        %v716 = vunpack.c.h.b16 %v504
        %v717 = vunpack.c.l.b16 %v505
        %v718 = vunpack.c.h.b16 %v505
        %v719 = vunpack.c.l.b16 %v506
        %v720 = vunpack.c.h.b16 %v506
        %v721 = vunpack.c.l.b16 %v507
        %v722 = vunpack.c.h.b16 %v507
        %v723 = vunpack.c.l.b16 %v508
        %v724 = vunpack.c.h.b16 %v508
        %v725 = vpack.c.b16 %v583, %v581
        %v726 = vpack.c.b16 %v584, %v582
        %v727 = vpack.c.b16 %v587, %v585
        %v728 = vpack.c.b16 %v588, %v586
        %v729 = vpack.c.b16 %v591, %v589
        %v730 = vpack.c.b16 %v592, %v590
        %v731 = vpack.c.b16 %v595, %v593
        %v732 = vpack.c.b16 %v596, %v594
        %v733 = vpack.c.b16 %v599, %v597
        %v734 = vpack.c.b16 %v600, %v598
        %v735 = vpack.c.b16 %v603, %v601
        %v736 = vpack.c.b16 %v604, %v602
        %v737 = vpack.c.b16 %v607, %v605
        %v738 = vpack.c.b16 %v608, %v606
        %v739 = vpack.c.b16 %v611, %v609
        %v740 = vpack.c.b16 %v612, %v610
        %v741 = vpack.c.b16 %v615, %v613
        %v742 = vpack.c.b16 %v616, %v614
        %v743 = vpack.c.b16 %v619, %v617
        %v744 = vpack.c.b16 %v620, %v618
        %v745 = vpack.c.b16 %v623, %v621
        %v746 = vpack.c.b16 %v624, %v622
        %v747 = vpack.c.b16 %v627, %v625
        %v748 = vpack.c.b16 %v628, %v626
        %v749 = vpack.c.b16 %v631, %v629
        %v750 = vpack.c.b16 %v632, %v630
        %v751 = vpack.c.b16 %v635, %v633
        %v752 = vpack.c.b16 %v636, %v634
        %v753 = vpack.c.b16 %v639, %v637
        %v754 = vpack.c.b16 %v640, %v638
        %v755 = vpack.c.b16 %v643, %v641
        %v756 = vpack.c.b16 %v644, %v642
        %v757 = vpack.c.b16 %v647, %v645
        %v758 = vpack.c.b16 %v648, %v646
        %v759 = vpack.c.b16 %v651, %v649
        %v760 = vpack.c.b16 %v652, %v650
        %v761 = vpack.c.b16 %v655, %v653
        %v762 = vpack.c.b16 %v656, %v654
        %v763 = vpack.c.b16 %v659, %v657
        %v764 = vpack.c.b16 %v660, %v658
        %v765 = vpack.c.b16 %v663, %v661
        %v766 = vpack.c.b16 %v664, %v662
        %v767 = vpack.c.b16 %v667, %v665
        %v768 = vpack.c.b16 %v668, %v666
        %v769 = vpack.c.b16 %v671, %v669
        %v770 = vpack.c.b16 %v672, %v670
        %v771 = vpack.c.b16 %v675, %v673
        %v772 = vpack.c.b16 %v676, %v674
        %v773 = vpack.c.b16 %v679, %v677
        %v774 = vpack.c.b16 %v680, %v678
        %v775 = vpack.c.b16 %v683, %v681
        %v776 = vpack.c.b16 %v684, %v682
        %v777 = vpack.c.b16 %v687, %v685
        %v778 = vpack.c.b16 %v688, %v686
        %v779 = vpack.c.b16 %v691, %v689
        %v780 = vpack.c.b16 %v692, %v690
        %v781 = vpack.c.b16 %v695, %v693
        %v782 = vpack.c.b16 %v696, %v694
        %v783 = vpack.c.b16 %v699, %v697
        %v784 = vpack.c.b16 %v700, %v698
        %v785 = vpack.c.b16 %v703, %v701
        %v786 = vpack.c.b16 %v704, %v702
        %v787 = vpack.c.b16 %v707, %v705
        %v788 = vpack.c.b16 %v708, %v706
        %v789 = vpack.c.b16 %v711, %v709
        %v790 = vpack.c.b16 %v712, %v710
        %v791 = vpack.c.b16 %v715, %v713
        %v792 = vpack.c.b16 %v716, %v714
        %v793 = vpack.c.b16 %v719, %v717
        %v794 = vpack.c.b16 %v720, %v718
        %v795 = vpack.c.b16 %v723, %v721
        %v796 = vpack.c.b16 %v724, %v722
        %vm869 = vcmask 523264
        %v871 = vsel %vm869, %v361, 0
        %v874 = vsel %vm869, %v366, 0
        %v877 = vsel %vm869, %v371, 0
        %v880 = vsel %vm869, %v376, 0
        %v883 = vsel %vm869, %v381, 0
        %v886 = vsel %vm869, %v386, 0
        %v889 = vsel %vm869, %v391, 0
        %v892 = vsel %vm869, %v396, 0
        %v895 = vsel %vm869, %v401, 0
        %v898 = vsel %vm869, %v406, 0
        %v901 = vsel %vm869, %v411, 0
        %v904 = vsel %vm869, %v416, 0
        %v907 = vsel %vm869, %v421, 0
        %v910 = vsel %vm869, %v426, 0
        %v913 = vsel %vm869, %v431, 0
        %v916 = vsel %vm869, %v436, 0
        %918 = vmatprep.subr.bf16.mxu0 %v726
        %919 = vmatpush1.bf16.msra.mxu0 %v725
        %920 = vmatprep.subr.bf16.mxu0 %v728
        %921 = vmatpush1.bf16.msra.mxu0 %v727
        %922 = vmatprep.subr.bf16.mxu0 %v730
        %923 = vmatpush1.bf16.msra.mxu0 %v729
        %924 = vmatprep.subr.bf16.mxu0 %v732
        %925 = vmatpush1.bf16.msra.mxu0 %v731
        %926 = vmatprep.subr.bf16.mxu0 %v734
        %927 = vmatpush1.bf16.msra.mxu0 %v733
        %928 = vmatprep.subr.bf16.mxu0 %v736
        %929 = vmatpush1.bf16.msra.mxu0 %v735
        %930 = vmatprep.subr.bf16.mxu0 %v738
        %931 = vmatpush1.bf16.msra.mxu0 %v737
        %932 = vmatprep.subr.bf16.mxu0 %v740
        %933 = vmatpush1.bf16.msra.mxu0 %v739
        %934 = vmatprep.subr.bf16.mxu0 %v742
        %935 = vmatpush1.bf16.msra.mxu0 %v741
        %936 = vmatprep.subr.bf16.mxu0 %v744
        %937 = vmatpush1.bf16.msra.mxu0 %v743
        %938 = vmatprep.subr.bf16.mxu0 %v746
        %939 = vmatpush1.bf16.msra.mxu0 %v745
        %940 = vmatprep.subr.bf16.mxu0 %v748
        %941 = vmatpush1.bf16.msra.mxu0 %v747
        %942 = vmatprep.subr.bf16.mxu0 %v750
        %943 = vmatpush1.bf16.msra.mxu0 %v749
        %944 = vmatprep.subr.bf16.mxu0 %v752
        %945 = vmatpush1.bf16.msra.mxu0 %v751
        %946 = vmatprep.subr.bf16.mxu0 %v754
        %947 = vmatpush1.bf16.msra.mxu0 %v753
        %948 = vmatprep.subr.bf16.mxu0 %v756
        %949 = vmatpush1.bf16.msra.mxu0 %v755
        %950 = vmatprep.mubr.bf16.mxu0 %v358
        %951 = vmatmul.mubr.bf16.gmra.mrb[0].mxu0 %v357
        %v952 = vpop.f32.mrb[0].mxu0
        %v953 = vadd.f32 0.0, %v952
        %v954 = vpop.f32.mrb[0].mxu0
        %v955 = vadd.f32 0.0, %v954
        %v956 = vpop.f32.mrb[0].mxu0
        %v957 = vadd.f32 0.0, %v956
        %v958 = vpop.f32.mrb[0].mxu0
        %v959 = vadd.f32 0.0, %v958
        %960 = vmatprep.mubr.bf16.mxu0 %v363
        %961 = vmatmul.mubr.bf16.gmra.mrb[0].mxu0 %v362
        %v962 = vpop.f32.mrb[0].mxu0
        %v963 = vadd.f32 0.0, %v962
        %v964 = vpop.f32.mrb[0].mxu0
        %v965 = vadd.f32 0.0, %v964
        %v966 = vpop.f32.mrb[0].mxu0
        %v967 = vadd.f32 0.0, %v966
        %v968 = vpop.f32.mrb[0].mxu0
        %v969 = vadd.f32 0.0, %v968
        %970 = vmatprep.mubr.bf16.mxu0 %v368
        %971 = vmatmul.mubr.bf16.gmra.mrb[0].mxu0 %v367
        %v972 = vpop.f32.mrb[0].mxu0
        %v973 = vadd.f32 0.0, %v972
        %v974 = vpop.f32.mrb[0].mxu0
        %v975 = vadd.f32 0.0, %v974
        %v976 = vpop.f32.mrb[0].mxu0
        %v977 = vadd.f32 0.0, %v976
        %v978 = vpop.f32.mrb[0].mxu0
        %v979 = vadd.f32 0.0, %v978
        %980 = vmatprep.mubr.bf16.mxu0 %v373
        %981 = vmatmul.mubr.bf16.gmra.mrb[0].mxu0 %v372
        %v982 = vpop.f32.mrb[0].mxu0
        %v983 = vadd.f32 0.0, %v982
        %v984 = vpop.f32.mrb[0].mxu0
        %v985 = vadd.f32 0.0, %v984
        %v986 = vpop.f32.mrb[0].mxu0
        %v987 = vadd.f32 0.0, %v986
        %v988 = vpop.f32.mrb[0].mxu0
        %v989 = vadd.f32 0.0, %v988
        %990 = vmatprep.mubr.bf16.mxu0 %v378
        %991 = vmatmul.mubr.bf16.gmra.mrb[0].mxu0 %v377
        %v992 = vpop.f32.mrb[0].mxu0
        %v993 = vadd.f32 0.0, %v992
        %v994 = vpop.f32.mrb[0].mxu0
        %v995 = vadd.f32 0.0, %v994
        %v996 = vpop.f32.mrb[0].mxu0
        %v997 = vadd.f32 0.0, %v996
        %v998 = vpop.f32.mrb[0].mxu0
        %v999 = vadd.f32 0.0, %v998
        %1000 = vmatprep.mubr.bf16.mxu0 %v383
        %1001 = vmatmul.mubr.bf16.gmra.mrb[0].mxu0 %v382
        %v1002 = vpop.f32.mrb[0].mxu0
        %v1003 = vadd.f32 0.0, %v1002
        %v1004 = vpop.f32.mrb[0].mxu0
        %v1005 = vadd.f32 0.0, %v1004
        %v1006 = vpop.f32.mrb[0].mxu0
        %v1007 = vadd.f32 0.0, %v1006
        %v1008 = vpop.f32.mrb[0].mxu0
        %v1009 = vadd.f32 0.0, %v1008
        %1010 = vmatprep.mubr.bf16.mxu0 %v388
        %1011 = vmatmul.mubr.bf16.gmra.mrb[0].mxu0 %v387
        %v1012 = vpop.f32.mrb[0].mxu0
        %v1013 = vadd.f32 0.0, %v1012
        %v1014 = vpop.f32.mrb[0].mxu0
        %v1015 = vadd.f32 0.0, %v1014
        %v1016 = vpop.f32.mrb[0].mxu0
        %v1017 = vadd.f32 0.0, %v1016
        %v1018 = vpop.f32.mrb[0].mxu0
        %v1019 = vadd.f32 0.0, %v1018
        %1020 = vmatprep.mubr.bf16.mxu0 %v393
        %1021 = vmatmul.mubr.bf16.gmra.mrb[0].mxu0 %v392
        %v1022 = vpop.f32.mrb[0].mxu0
        %v1023 = vadd.f32 0.0, %v1022
        %v1024 = vpop.f32.mrb[0].mxu0
        %v1025 = vadd.f32 0.0, %v1024
        %v1026 = vpop.f32.mrb[0].mxu0
        %v1027 = vadd.f32 0.0, %v1026
        %v1028 = vpop.f32.mrb[0].mxu0
        %v1029 = vadd.f32 0.0, %v1028
        %1030 = vmatprep.mubr.bf16.mxu0 %v398
        %1031 = vmatmul.mubr.bf16.gmra.mrb[0].mxu0 %v397
        %v1032 = vpop.f32.mrb[0].mxu0
        %v1033 = vadd.f32 0.0, %v1032
        %v1034 = vpop.f32.mrb[0].mxu0
        %v1035 = vadd.f32 0.0, %v1034
        %v1036 = vpop.f32.mrb[0].mxu0
        %v1037 = vadd.f32 0.0, %v1036
        %v1038 = vpop.f32.mrb[0].mxu0
        %v1039 = vadd.f32 0.0, %v1038
        %1040 = vmatprep.mubr.bf16.mxu0 %v403
        %1041 = vmatmul.mubr.bf16.gmra.mrb[0].mxu0 %v402
        %v1042 = vpop.f32.mrb[0].mxu0
        %v1043 = vadd.f32 0.0, %v1042
        %v1044 = vpop.f32.mrb[0].mxu0
        %v1045 = vadd.f32 0.0, %v1044
        %v1046 = vpop.f32.mrb[0].mxu0
        %v1047 = vadd.f32 0.0, %v1046
        %v1048 = vpop.f32.mrb[0].mxu0
        %v1049 = vadd.f32 0.0, %v1048
        %1050 = vmatprep.mubr.bf16.mxu0 %v408
        %1051 = vmatmul.mubr.bf16.gmra.mrb[0].mxu0 %v407
        %v1052 = vpop.f32.mrb[0].mxu0
        %v1053 = vadd.f32 0.0, %v1052
        %v1054 = vpop.f32.mrb[0].mxu0
        %v1055 = vadd.f32 0.0, %v1054
        %v1056 = vpop.f32.mrb[0].mxu0
        %v1057 = vadd.f32 0.0, %v1056
        %v1058 = vpop.f32.mrb[0].mxu0
        %v1059 = vadd.f32 0.0, %v1058
        %1060 = vmatprep.mubr.bf16.mxu0 %v413
        %1061 = vmatmul.mubr.bf16.gmra.mrb[0].mxu0 %v412
        %v1062 = vpop.f32.mrb[0].mxu0
        %v1063 = vadd.f32 0.0, %v1062
        %v1064 = vpop.f32.mrb[0].mxu0
        %v1065 = vadd.f32 0.0, %v1064
        %v1066 = vpop.f32.mrb[0].mxu0
        %v1067 = vadd.f32 0.0, %v1066
        %v1068 = vpop.f32.mrb[0].mxu0
        %v1069 = vadd.f32 0.0, %v1068
        %1070 = vmatprep.mubr.bf16.mxu0 %v418
        %1071 = vmatmul.mubr.bf16.gmra.mrb[0].mxu0 %v417
        %v1072 = vpop.f32.mrb[0].mxu0
        %v1073 = vadd.f32 0.0, %v1072
        %v1074 = vpop.f32.mrb[0].mxu0
        %v1075 = vadd.f32 0.0, %v1074
        %v1076 = vpop.f32.mrb[0].mxu0
        %v1077 = vadd.f32 0.0, %v1076
        %v1078 = vpop.f32.mrb[0].mxu0
        %v1079 = vadd.f32 0.0, %v1078
        %1080 = vmatprep.mubr.bf16.mxu0 %v423
        %1081 = vmatmul.mubr.bf16.gmra.mrb[0].mxu0 %v422
        %v1082 = vpop.f32.mrb[0].mxu0
        %v1083 = vadd.f32 0.0, %v1082
        %v1084 = vpop.f32.mrb[0].mxu0
        %v1085 = vadd.f32 0.0, %v1084
        %v1086 = vpop.f32.mrb[0].mxu0
        %v1087 = vadd.f32 0.0, %v1086
        %v1088 = vpop.f32.mrb[0].mxu0
        %v1089 = vadd.f32 0.0, %v1088
        %1090 = vmatprep.mubr.bf16.mxu0 %v428
        %1091 = vmatmul.mubr.bf16.gmra.mrb[0].mxu0 %v427
        %v1092 = vpop.f32.mrb[0].mxu0
        %v1093 = vadd.f32 0.0, %v1092
        %v1094 = vpop.f32.mrb[0].mxu0
        %v1095 = vadd.f32 0.0, %v1094
        %v1096 = vpop.f32.mrb[0].mxu0
        %v1097 = vadd.f32 0.0, %v1096
        %v1098 = vpop.f32.mrb[0].mxu0
        %v1099 = vadd.f32 0.0, %v1098
        %1100 = vmatprep.mubr.bf16.mxu0 %v433
        %1101 = vmatmul.mubr.bf16.gmra.mrb[0].mxu0 %v432
        %v1102 = vpop.f32.mrb[0].mxu0
        %v1103 = vadd.f32 0.0, %v1102
        %v1104 = vpop.f32.mrb[0].mxu0
        %v1105 = vadd.f32 0.0, %v1104
        %v1106 = vpop.f32.mrb[0].mxu0
        %v1107 = vadd.f32 0.0, %v1106
        %v1108 = vpop.f32.mrb[0].mxu0
        %v1109 = vadd.f32 0.0, %v1108
        %1110 = vdwg.mxu0
        %1111 = vmatprep.subr.bf16.mxu0 %v758
        %1112 = vmatpush1.bf16.msra.mxu0 %v757
        %1113 = vmatprep.subr.bf16.mxu0 %v760
        %1114 = vmatpush1.bf16.msra.mxu0 %v759
        %1115 = vmatprep.subr.bf16.mxu0 %v762
        %1116 = vmatpush1.bf16.msra.mxu0 %v761
        %1117 = vmatprep.subr.bf16.mxu0 %v764
        %1118 = vmatpush1.bf16.msra.mxu0 %v763
        %1119 = vmatprep.subr.bf16.mxu0 %v766
        %1120 = vmatpush1.bf16.msra.mxu0 %v765
        %1121 = vmatprep.subr.bf16.mxu0 %v768
        %1122 = vmatpush1.bf16.msra.mxu0 %v767
        %1123 = vmatprep.subr.bf16.mxu0 %v770
        %1124 = vmatpush1.bf16.msra.mxu0 %v769
        %1125 = vmatprep.subr.bf16.mxu0 %v772
        %1126 = vmatpush1.bf16.msra.mxu0 %v771
        %1127 = vmatprep.subr.bf16.mxu0 %v774
        %1128 = vmatpush1.bf16.msra.mxu0 %v773
        %1129 = vmatprep.subr.bf16.mxu0 %v776
        %1130 = vmatpush1.bf16.msra.mxu0 %v775
        %1131 = vmatprep.subr.bf16.mxu0 %v778
        %1132 = vmatpush1.bf16.msra.mxu0 %v777
        %1133 = vmatprep.subr.bf16.mxu0 %v780
        %1134 = vmatpush1.bf16.msra.mxu0 %v779
        %1135 = vmatprep.subr.bf16.mxu0 %v782
        %1136 = vmatpush1.bf16.msra.mxu0 %v781
        %1137 = vmatprep.subr.bf16.mxu0 %v784
        %1138 = vmatpush1.bf16.msra.mxu0 %v783
        %1139 = vmatprep.subr.bf16.mxu0 %v786
        %1140 = vmatpush1.bf16.msra.mxu0 %v785
        %1141 = vmatprep.subr.bf16.mxu0 %v788
        %1142 = vmatpush1.bf16.msra.mxu0 %v787
        %1143 = vmatprep.mubr.bf16.mxu0 %v360
        %1144 = vmatmul.mubr.bf16.gmra.mrb[0].mxu0 %v359
        %v1145 = vpop.f32.mrb[0].mxu0
        %v1146 = vadd.f32 %v953, %v1145
        %v1147 = vpop.f32.mrb[0].mxu0
        %v1148 = vadd.f32 %v955, %v1147
        %v1149 = vpop.f32.mrb[0].mxu0
        %v1150 = vadd.f32 %v957, %v1149
        %v1151 = vpop.f32.mrb[0].mxu0
        %v1152 = vadd.f32 %v959, %v1151
        %1153 = vmatprep.mubr.bf16.mxu0 %v365
        %1154 = vmatmul.mubr.bf16.gmra.mrb[0].mxu0 %v364
        %v1155 = vpop.f32.mrb[0].mxu0
        %v1156 = vadd.f32 %v963, %v1155
        %v1157 = vpop.f32.mrb[0].mxu0
        %v1158 = vadd.f32 %v965, %v1157
        %v1159 = vpop.f32.mrb[0].mxu0
        %v1160 = vadd.f32 %v967, %v1159
        %v1161 = vpop.f32.mrb[0].mxu0
        %v1162 = vadd.f32 %v969, %v1161
        %1163 = vmatprep.mubr.bf16.mxu0 %v370
        %1164 = vmatmul.mubr.bf16.gmra.mrb[0].mxu0 %v369
        %v1165 = vpop.f32.mrb[0].mxu0
        %v1166 = vadd.f32 %v973, %v1165
        %v1167 = vpop.f32.mrb[0].mxu0
        %v1168 = vadd.f32 %v975, %v1167
        %v1169 = vpop.f32.mrb[0].mxu0
        %v1170 = vadd.f32 %v977, %v1169
        %v1171 = vpop.f32.mrb[0].mxu0
        %v1172 = vadd.f32 %v979, %v1171
        %1173 = vmatprep.mubr.bf16.mxu0 %v375
        %1174 = vmatmul.mubr.bf16.gmra.mrb[0].mxu0 %v374
        %v1175 = vpop.f32.mrb[0].mxu0
        %v1176 = vadd.f32 %v983, %v1175
        %v1177 = vpop.f32.mrb[0].mxu0
        %v1178 = vadd.f32 %v985, %v1177
        %v1179 = vpop.f32.mrb[0].mxu0
        %v1180 = vadd.f32 %v987, %v1179
        %v1181 = vpop.f32.mrb[0].mxu0
        %v1182 = vadd.f32 %v989, %v1181
        %1183 = vmatprep.mubr.bf16.mxu0 %v380
        %1184 = vmatmul.mubr.bf16.gmra.mrb[0].mxu0 %v379
        %v1185 = vpop.f32.mrb[0].mxu0
        %v1186 = vadd.f32 %v993, %v1185
        %v1187 = vpop.f32.mrb[0].mxu0
        %v1188 = vadd.f32 %v995, %v1187
        %v1189 = vpop.f32.mrb[0].mxu0
        %v1190 = vadd.f32 %v997, %v1189
        %v1191 = vpop.f32.mrb[0].mxu0
        %v1192 = vadd.f32 %v999, %v1191
        %1193 = vmatprep.mubr.bf16.mxu0 %v385
        %1194 = vmatmul.mubr.bf16.gmra.mrb[0].mxu0 %v384
        %v1195 = vpop.f32.mrb[0].mxu0
        %v1196 = vadd.f32 %v1003, %v1195
        %v1197 = vpop.f32.mrb[0].mxu0
        %v1198 = vadd.f32 %v1005, %v1197
        %v1199 = vpop.f32.mrb[0].mxu0
        %v1200 = vadd.f32 %v1007, %v1199
        %v1201 = vpop.f32.mrb[0].mxu0
        %v1202 = vadd.f32 %v1009, %v1201
        %1203 = vmatprep.mubr.bf16.mxu0 %v390
        %1204 = vmatmul.mubr.bf16.gmra.mrb[0].mxu0 %v389
        %v1205 = vpop.f32.mrb[0].mxu0
        %v1206 = vadd.f32 %v1013, %v1205
        %v1207 = vpop.f32.mrb[0].mxu0
        %v1208 = vadd.f32 %v1015, %v1207
        %v1209 = vpop.f32.mrb[0].mxu0
        %v1210 = vadd.f32 %v1017, %v1209
        %v1211 = vpop.f32.mrb[0].mxu0
        %v1212 = vadd.f32 %v1019, %v1211
        %1213 = vmatprep.mubr.bf16.mxu0 %v395
        %1214 = vmatmul.mubr.bf16.gmra.mrb[0].mxu0 %v394
        %v1215 = vpop.f32.mrb[0].mxu0
        %v1216 = vadd.f32 %v1023, %v1215
        %v1217 = vpop.f32.mrb[0].mxu0
        %v1218 = vadd.f32 %v1025, %v1217
        %v1219 = vpop.f32.mrb[0].mxu0
        %v1220 = vadd.f32 %v1027, %v1219
        %v1221 = vpop.f32.mrb[0].mxu0
        %v1222 = vadd.f32 %v1029, %v1221
        %1223 = vmatprep.mubr.bf16.mxu0 %v400
        %1224 = vmatmul.mubr.bf16.gmra.mrb[0].mxu0 %v399
        %v1225 = vpop.f32.mrb[0].mxu0
        %v1226 = vadd.f32 %v1033, %v1225
        %v1227 = vpop.f32.mrb[0].mxu0
        %v1228 = vadd.f32 %v1035, %v1227
        %v1229 = vpop.f32.mrb[0].mxu0
        %v1230 = vadd.f32 %v1037, %v1229
        %v1231 = vpop.f32.mrb[0].mxu0
        %v1232 = vadd.f32 %v1039, %v1231
        %1233 = vmatprep.mubr.bf16.mxu0 %v405
        %1234 = vmatmul.mubr.bf16.gmra.mrb[0].mxu0 %v404
        %v1235 = vpop.f32.mrb[0].mxu0
        %v1236 = vadd.f32 %v1043, %v1235
        %v1237 = vpop.f32.mrb[0].mxu0
        %v1238 = vadd.f32 %v1045, %v1237
        %v1239 = vpop.f32.mrb[0].mxu0
        %v1240 = vadd.f32 %v1047, %v1239
        %v1241 = vpop.f32.mrb[0].mxu0
        %v1242 = vadd.f32 %v1049, %v1241
        %1243 = vmatprep.mubr.bf16.mxu0 %v410
        %1244 = vmatmul.mubr.bf16.gmra.mrb[0].mxu0 %v409
        %v1245 = vpop.f32.mrb[0].mxu0
        %v1246 = vadd.f32 %v1053, %v1245
        %v1247 = vpop.f32.mrb[0].mxu0
        %v1248 = vadd.f32 %v1055, %v1247
        %v1249 = vpop.f32.mrb[0].mxu0
        %v1250 = vadd.f32 %v1057, %v1249
        %v1251 = vpop.f32.mrb[0].mxu0
        %v1252 = vadd.f32 %v1059, %v1251
        %1253 = vmatprep.mubr.bf16.mxu0 %v415
        %1254 = vmatmul.mubr.bf16.gmra.mrb[0].mxu0 %v414
        %v1255 = vpop.f32.mrb[0].mxu0
        %v1256 = vadd.f32 %v1063, %v1255
        %v1257 = vpop.f32.mrb[0].mxu0
        %v1258 = vadd.f32 %v1065, %v1257
        %v1259 = vpop.f32.mrb[0].mxu0
        %v1260 = vadd.f32 %v1067, %v1259
        %v1261 = vpop.f32.mrb[0].mxu0
        %v1262 = vadd.f32 %v1069, %v1261
        %1263 = vmatprep.mubr.bf16.mxu0 %v420
        %1264 = vmatmul.mubr.bf16.gmra.mrb[0].mxu0 %v419
        %v1265 = vpop.f32.mrb[0].mxu0
        %v1266 = vadd.f32 %v1073, %v1265
        %v1267 = vpop.f32.mrb[0].mxu0
        %v1268 = vadd.f32 %v1075, %v1267
        %v1269 = vpop.f32.mrb[0].mxu0
        %v1270 = vadd.f32 %v1077, %v1269
        %v1271 = vpop.f32.mrb[0].mxu0
        %v1272 = vadd.f32 %v1079, %v1271
        %1273 = vmatprep.mubr.bf16.mxu0 %v425
        %1274 = vmatmul.mubr.bf16.gmra.mrb[0].mxu0 %v424
        %v1275 = vpop.f32.mrb[0].mxu0
        %v1276 = vadd.f32 %v1083, %v1275
        %v1277 = vpop.f32.mrb[0].mxu0
        %v1278 = vadd.f32 %v1085, %v1277
        %v1279 = vpop.f32.mrb[0].mxu0
        %v1280 = vadd.f32 %v1087, %v1279
        %v1281 = vpop.f32.mrb[0].mxu0
        %v1282 = vadd.f32 %v1089, %v1281
        %1283 = vmatprep.mubr.bf16.mxu0 %v430
        %1284 = vmatmul.mubr.bf16.gmra.mrb[0].mxu0 %v429
        %v1285 = vpop.f32.mrb[0].mxu0
        %v1286 = vadd.f32 %v1093, %v1285
        %v1287 = vpop.f32.mrb[0].mxu0
        %v1288 = vadd.f32 %v1095, %v1287
        %v1289 = vpop.f32.mrb[0].mxu0
        %v1290 = vadd.f32 %v1097, %v1289
        %v1291 = vpop.f32.mrb[0].mxu0
        %v1292 = vadd.f32 %v1099, %v1291
        %1293 = vmatprep.mubr.bf16.mxu0 %v435
        %1294 = vmatmul.mubr.bf16.gmra.mrb[0].mxu0 %v434
        %v1295 = vpop.f32.mrb[0].mxu0
        %v1296 = vadd.f32 %v1103, %v1295
        %v1297 = vpop.f32.mrb[0].mxu0
        %v1298 = vadd.f32 %v1105, %v1297
        %v1299 = vpop.f32.mrb[0].mxu0
        %v1300 = vadd.f32 %v1107, %v1299
        %v1301 = vpop.f32.mrb[0].mxu0
        %v1302 = vadd.f32 %v1109, %v1301
        %1303 = vdwg.mxu0
        %1304 = vmatprep.subr.bf16.mxu0 %v790
        %1305 = vmatpush1.bf16.msra.mxu0 %v789
        %1306 = vmatprep.subr.bf16.mxu0 %v792
        %1307 = vmatpush1.bf16.msra.mxu0 %v791
        %1308 = vmatprep.subr.bf16.mxu0 %v794
        %1309 = vmatpush1.bf16.msra.mxu0 %v793
        %1310 = vmatprep.subr.bf16.mxu0 %v796
        %1311 = vmatpush1.bf16.msra.mxu0 %v795
        %1312 = vmatprep.subr.bf16.mxu0 0
        %1313 = vmatpush1.bf16.msra.mxu0 0
        %1314 = vmatprep.subr.bf16.mxu0 0
        %1315 = vmatpush1.bf16.msra.mxu0 0
        %1316 = vmatprep.subr.bf16.mxu0 0
        %1317 = vmatpush1.bf16.msra.mxu0 0
        %1318 = vmatprep.subr.bf16.mxu0 0
        %1319 = vmatpush1.bf16.msra.mxu0 0
        %1320 = vmatprep.subr.bf16.mxu0 0
        %1321 = vmatpush1.bf16.msra.mxu0 0
        %1322 = vmatprep.subr.bf16.mxu0 0
        %1323 = vmatpush1.bf16.msra.mxu0 0
        %1324 = vmatprep.subr.bf16.mxu0 0
        %1325 = vmatpush1.bf16.msra.mxu0 0
        %1326 = vmatprep.subr.bf16.mxu0 0
        %1327 = vmatpush1.bf16.msra.mxu0 0
        %1328 = vmatprep.subr.bf16.mxu0 0
        %1329 = vmatpush1.bf16.msra.mxu0 0
        %1330 = vmatprep.subr.bf16.mxu0 0
        %1331 = vmatpush1.bf16.msra.mxu0 0
        %1332 = vmatprep.subr.bf16.mxu0 0
        %1333 = vmatpush1.bf16.msra.mxu0 0
        %1334 = vmatprep.subr.bf16.mxu0 0
        %1335 = vmatpush1.bf16.msra.mxu0 0
        %1336 = vmatprep.mubr.bf16.mxu0 0
        %1337 = vmatmul.mubr.bf16.gmra.mrb[0].mxu0 %v871
        %v1338 = vpop.f32.mrb[0].mxu0
        %v1339 = vadd.f32 %v1146, %v1338
        %v1340 = vpop.f32.mrb[0].mxu0
        %v1341 = vadd.f32 %v1148, %v1340
        %v1342 = vpop.f32.mrb[0].mxu0
        %v1343 = vadd.f32 %v1150, %v1342
        %v1344 = vpop.f32.mrb[0].mxu0
        %v1345 = vadd.f32 %v1152, %v1344
        %1346 = vmatprep.mubr.bf16.mxu0 0
        %1347 = vmatmul.mubr.bf16.gmra.mrb[0].mxu0 %v874
        %v1348 = vpop.f32.mrb[0].mxu0
        %v1349 = vadd.f32 %v1156, %v1348
        %v1350 = vpop.f32.mrb[0].mxu0
        %v1351 = vadd.f32 %v1158, %v1350
        %v1352 = vpop.f32.mrb[0].mxu0
        %v1353 = vadd.f32 %v1160, %v1352
        %v1354 = vpop.f32.mrb[0].mxu0
        %v1355 = vadd.f32 %v1162, %v1354
        %1356 = vmatprep.mubr.bf16.mxu0 0
        %1357 = vmatmul.mubr.bf16.gmra.mrb[0].mxu0 %v877
        %v1358 = vpop.f32.mrb[0].mxu0
        %v1359 = vadd.f32 %v1166, %v1358
        %v1360 = vpop.f32.mrb[0].mxu0
        %v1361 = vadd.f32 %v1168, %v1360
        %v1362 = vpop.f32.mrb[0].mxu0
        %v1363 = vadd.f32 %v1170, %v1362
        %v1364 = vpop.f32.mrb[0].mxu0
        %v1365 = vadd.f32 %v1172, %v1364
        %1366 = vmatprep.mubr.bf16.mxu0 0
        %1367 = vmatmul.mubr.bf16.gmra.mrb[0].mxu0 %v880
        %v1368 = vpop.f32.mrb[0].mxu0
        %v1369 = vadd.f32 %v1176, %v1368
        %v1370 = vpop.f32.mrb[0].mxu0
        %v1371 = vadd.f32 %v1178, %v1370
        %v1372 = vpop.f32.mrb[0].mxu0
        %v1373 = vadd.f32 %v1180, %v1372
        %v1374 = vpop.f32.mrb[0].mxu0
        %v1375 = vadd.f32 %v1182, %v1374
        %1376 = vmatprep.mubr.bf16.mxu0 0
        %1377 = vmatmul.mubr.bf16.gmra.mrb[0].mxu0 %v883
        %v1378 = vpop.f32.mrb[0].mxu0
        %v1379 = vadd.f32 %v1186, %v1378
        %v1380 = vpop.f32.mrb[0].mxu0
        %v1381 = vadd.f32 %v1188, %v1380
        %v1382 = vpop.f32.mrb[0].mxu0
        %v1383 = vadd.f32 %v1190, %v1382
        %v1384 = vpop.f32.mrb[0].mxu0
        %v1385 = vadd.f32 %v1192, %v1384
        %1386 = vmatprep.mubr.bf16.mxu0 0
        %1387 = vmatmul.mubr.bf16.gmra.mrb[0].mxu0 %v886
        %v1388 = vpop.f32.mrb[0].mxu0
        %v1389 = vadd.f32 %v1196, %v1388
        %v1390 = vpop.f32.mrb[0].mxu0
        %v1391 = vadd.f32 %v1198, %v1390
        %v1392 = vpop.f32.mrb[0].mxu0
        %v1393 = vadd.f32 %v1200, %v1392
        %v1394 = vpop.f32.mrb[0].mxu0
        %v1395 = vadd.f32 %v1202, %v1394
        %1396 = vmatprep.mubr.bf16.mxu0 0
        %1397 = vmatmul.mubr.bf16.gmra.mrb[0].mxu0 %v889
        %v1398 = vpop.f32.mrb[0].mxu0
        %v1399 = vadd.f32 %v1206, %v1398
        %v1400 = vpop.f32.mrb[0].mxu0
        %v1401 = vadd.f32 %v1208, %v1400
        %v1402 = vpop.f32.mrb[0].mxu0
        %v1403 = vadd.f32 %v1210, %v1402
        %v1404 = vpop.f32.mrb[0].mxu0
        %v1405 = vadd.f32 %v1212, %v1404
        %1406 = vmatprep.mubr.bf16.mxu0 0
        %1407 = vmatmul.mubr.bf16.gmra.mrb[0].mxu0 %v892
        %v1408 = vpop.f32.mrb[0].mxu0
        %v1409 = vadd.f32 %v1216, %v1408
        %v1410 = vpop.f32.mrb[0].mxu0
        %v1411 = vadd.f32 %v1218, %v1410
        %v1412 = vpop.f32.mrb[0].mxu0
        %v1413 = vadd.f32 %v1220, %v1412
        %v1414 = vpop.f32.mrb[0].mxu0
        %v1415 = vadd.f32 %v1222, %v1414
        %1416 = vmatprep.mubr.bf16.mxu0 0
        %1417 = vmatmul.mubr.bf16.gmra.mrb[0].mxu0 %v895
        %v1418 = vpop.f32.mrb[0].mxu0
        %v1419 = vadd.f32 %v1226, %v1418
        %v1420 = vpop.f32.mrb[0].mxu0
        %v1421 = vadd.f32 %v1228, %v1420
        %v1422 = vpop.f32.mrb[0].mxu0
        %v1423 = vadd.f32 %v1230, %v1422
        %v1424 = vpop.f32.mrb[0].mxu0
        %v1425 = vadd.f32 %v1232, %v1424
        %1426 = vmatprep.mubr.bf16.mxu0 0
        %1427 = vmatmul.mubr.bf16.gmra.mrb[0].mxu0 %v898
        %v1428 = vpop.f32.mrb[0].mxu0
        %v1429 = vadd.f32 %v1236, %v1428
        %v1430 = vpop.f32.mrb[0].mxu0
        %v1431 = vadd.f32 %v1238, %v1430
        %v1432 = vpop.f32.mrb[0].mxu0
        %v1433 = vadd.f32 %v1240, %v1432
        %v1434 = vpop.f32.mrb[0].mxu0
        %v1435 = vadd.f32 %v1242, %v1434
        %1436 = vmatprep.mubr.bf16.mxu0 0
        %1437 = vmatmul.mubr.bf16.gmra.mrb[0].mxu0 %v901
        %v1438 = vpop.f32.mrb[0].mxu0
        %v1439 = vadd.f32 %v1246, %v1438
        %v1440 = vpop.f32.mrb[0].mxu0
        %v1441 = vadd.f32 %v1248, %v1440
        %v1442 = vpop.f32.mrb[0].mxu0
        %v1443 = vadd.f32 %v1250, %v1442
        %v1444 = vpop.f32.mrb[0].mxu0
        %v1445 = vadd.f32 %v1252, %v1444
        %1446 = vmatprep.mubr.bf16.mxu0 0
        %1447 = vmatmul.mubr.bf16.gmra.mrb[0].mxu0 %v904
        %v1448 = vpop.f32.mrb[0].mxu0
        %v1449 = vadd.f32 %v1256, %v1448
        %v1450 = vpop.f32.mrb[0].mxu0
        %v1451 = vadd.f32 %v1258, %v1450
        %v1452 = vpop.f32.mrb[0].mxu0
        %v1453 = vadd.f32 %v1260, %v1452
        %v1454 = vpop.f32.mrb[0].mxu0
        %v1455 = vadd.f32 %v1262, %v1454
        %1456 = vmatprep.mubr.bf16.mxu0 0
        %1457 = vmatmul.mubr.bf16.gmra.mrb[0].mxu0 %v907
        %v1458 = vpop.f32.mrb[0].mxu0
        %v1459 = vadd.f32 %v1266, %v1458
        %v1460 = vpop.f32.mrb[0].mxu0
        %v1461 = vadd.f32 %v1268, %v1460
        %v1462 = vpop.f32.mrb[0].mxu0
        %v1463 = vadd.f32 %v1270, %v1462
        %v1464 = vpop.f32.mrb[0].mxu0
        %v1465 = vadd.f32 %v1272, %v1464
        %1466 = vmatprep.mubr.bf16.mxu0 0
        %1467 = vmatmul.mubr.bf16.gmra.mrb[0].mxu0 %v910
        %v1468 = vpop.f32.mrb[0].mxu0
        %v1469 = vadd.f32 %v1276, %v1468
        %v1470 = vpop.f32.mrb[0].mxu0
        %v1471 = vadd.f32 %v1278, %v1470
        %v1472 = vpop.f32.mrb[0].mxu0
        %v1473 = vadd.f32 %v1280, %v1472
        %v1474 = vpop.f32.mrb[0].mxu0
        %v1475 = vadd.f32 %v1282, %v1474
        %1476 = vmatprep.mubr.bf16.mxu0 0
        %1477 = vmatmul.mubr.bf16.gmra.mrb[0].mxu0 %v913
        %v1478 = vpop.f32.mrb[0].mxu0
        %v1479 = vadd.f32 %v1286, %v1478
        %v1480 = vpop.f32.mrb[0].mxu0
        %v1481 = vadd.f32 %v1288, %v1480
        %v1482 = vpop.f32.mrb[0].mxu0
        %v1483 = vadd.f32 %v1290, %v1482
        %v1484 = vpop.f32.mrb[0].mxu0
        %v1485 = vadd.f32 %v1292, %v1484
        %1486 = vmatprep.mubr.bf16.mxu0 0
        %1487 = vmatmul.mubr.bf16.gmra.mrb[0].mxu0 %v916
        %v1488 = vpop.f32.mrb[0].mxu0
        %v1489 = vadd.f32 %v1296, %v1488
        %v1490 = vpop.f32.mrb[0].mxu0
        %v1491 = vadd.f32 %v1298, %v1490
        %v1492 = vpop.f32.mrb[0].mxu0
        %v1493 = vadd.f32 %v1300, %v1492
        %v1494 = vpop.f32.mrb[0].mxu0
        %v1495 = vadd.f32 %v1302, %v1494
        %1496 = vdwg.mxu0
        %v1497 = vld [vmem:[%s2] sm:$0x3]
        %v1499 = vlaneseq
        %v1500 = vshrl.u32 %v1499, 7
        %v1501 = vsub.s32 0, %v1500
        %v1502 = vrot.slane %v1497, %v1501
        %v1503 = vlaneseq
        %v1504 = vshrl.u32 %v1503, 7
        %v1505 = vsub.s32 1, %v1504
        %v1506 = vrot.slane %v1497, %v1505
        %v1509 = vmul.f32 %v1339, %v1502
        %v1510 = vmul.f32 %v1341, %v1506
        %v1511 = vmul.f32 %v1343, %v1502
        %v1512 = vmul.f32 %v1345, %v1506
        %v1513 = vmul.f32 %v1349, %v1502
        %v1514 = vmul.f32 %v1351, %v1506
        %v1515 = vmul.f32 %v1353, %v1502
        %v1516 = vmul.f32 %v1355, %v1506
        %v1517 = vmul.f32 %v1359, %v1502
        %v1518 = vmul.f32 %v1361, %v1506
        %v1519 = vmul.f32 %v1363, %v1502
        %v1520 = vmul.f32 %v1365, %v1506
        %v1521 = vmul.f32 %v1369, %v1502
        %v1522 = vmul.f32 %v1371, %v1506
        %v1523 = vmul.f32 %v1373, %v1502
        %v1524 = vmul.f32 %v1375, %v1506
        %v1525 = vmul.f32 %v1379, %v1502
        %v1526 = vmul.f32 %v1381, %v1506
        %v1527 = vmul.f32 %v1383, %v1502
        %v1528 = vmul.f32 %v1385, %v1506
        %v1529 = vmul.f32 %v1389, %v1502
        %v1530 = vmul.f32 %v1391, %v1506
        %v1531 = vmul.f32 %v1393, %v1502
        %v1532 = vmul.f32 %v1395, %v1506
        %v1533 = vmul.f32 %v1399, %v1502
        %v1534 = vmul.f32 %v1401, %v1506
        %v1535 = vmul.f32 %v1403, %v1502
        %v1536 = vmul.f32 %v1405, %v1506
        %v1537 = vmul.f32 %v1409, %v1502
        %v1538 = vmul.f32 %v1411, %v1506
        %v1539 = vmul.f32 %v1413, %v1502
        %v1540 = vmul.f32 %v1415, %v1506
        %v1541 = vmul.f32 %v1419, %v1502
        %v1542 = vmul.f32 %v1421, %v1506
        %v1543 = vmul.f32 %v1423, %v1502
        %v1544 = vmul.f32 %v1425, %v1506
        %v1545 = vmul.f32 %v1429, %v1502
        %v1546 = vmul.f32 %v1431, %v1506
        %v1547 = vmul.f32 %v1433, %v1502
        %v1548 = vmul.f32 %v1435, %v1506
        %v1549 = vmul.f32 %v1439, %v1502
        %v1550 = vmul.f32 %v1441, %v1506
        %v1551 = vmul.f32 %v1443, %v1502
        %v1552 = vmul.f32 %v1445, %v1506
        %v1553 = vmul.f32 %v1449, %v1502
        %v1554 = vmul.f32 %v1451, %v1506
        %v1555 = vmul.f32 %v1453, %v1502
        %v1556 = vmul.f32 %v1455, %v1506
        %v1557 = vmul.f32 %v1459, %v1502
        %v1558 = vmul.f32 %v1461, %v1506
        %v1559 = vmul.f32 %v1463, %v1502
        %v1560 = vmul.f32 %v1465, %v1506
        %v1561 = vmul.f32 %v1469, %v1502
        %v1562 = vmul.f32 %v1471, %v1506
        %v1563 = vmul.f32 %v1473, %v1502
        %v1564 = vmul.f32 %v1475, %v1506
        %v1565 = vmul.f32 %v1479, %v1502
        %v1566 = vmul.f32 %v1481, %v1506
        %v1567 = vmul.f32 %v1483, %v1502
        %v1568 = vmul.f32 %v1485, %v1506
        %v1569 = vmul.f32 %v1489, %v1502
        %v1570 = vmul.f32 %v1491, %v1506
        %v1571 = vmul.f32 %v1493, %v1502
        %v1572 = vmul.f32 %v1495, %v1506
        %v1573 = vld [vmem:[%s3] sm:$0x3]
        %v1575 = vlaneseq
        %v1576 = vshrl.u32 %v1575, 7
        %v1577 = vsub.s32 0, %v1576
        %v1578 = vrot.slane %v1573, %v1577
        %v1579 = vlaneseq
        %v1580 = vshrl.u32 %v1579, 7
        %v1581 = vsub.s32 1, %v1580
        %v1582 = vrot.slane %v1573, %v1581
        %v1585 = vadd.f32 %v1509, %v1578
        %v1586 = vadd.f32 %v1510, %v1582
        %v1587 = vadd.f32 %v1511, %v1578
        %v1588 = vadd.f32 %v1512, %v1582
        %v1589 = vadd.f32 %v1513, %v1578
        %v1590 = vadd.f32 %v1514, %v1582
        %v1591 = vadd.f32 %v1515, %v1578
        %v1592 = vadd.f32 %v1516, %v1582
        %v1593 = vadd.f32 %v1517, %v1578
        %v1594 = vadd.f32 %v1518, %v1582
        %v1595 = vadd.f32 %v1519, %v1578
        %v1596 = vadd.f32 %v1520, %v1582
        %v1597 = vadd.f32 %v1521, %v1578
        %v1598 = vadd.f32 %v1522, %v1582
        %v1599 = vadd.f32 %v1523, %v1578
        %v1600 = vadd.f32 %v1524, %v1582
        %v1601 = vadd.f32 %v1525, %v1578
        %v1602 = vadd.f32 %v1526, %v1582
        %v1603 = vadd.f32 %v1527, %v1578
        %v1604 = vadd.f32 %v1528, %v1582
        %v1605 = vadd.f32 %v1529, %v1578
        %v1606 = vadd.f32 %v1530, %v1582
        %v1607 = vadd.f32 %v1531, %v1578
        %v1608 = vadd.f32 %v1532, %v1582
        %v1609 = vadd.f32 %v1533, %v1578
        %v1610 = vadd.f32 %v1534, %v1582
        %v1611 = vadd.f32 %v1535, %v1578
        %v1612 = vadd.f32 %v1536, %v1582
        %v1613 = vadd.f32 %v1537, %v1578
        %v1614 = vadd.f32 %v1538, %v1582
        %v1615 = vadd.f32 %v1539, %v1578
        %v1616 = vadd.f32 %v1540, %v1582
        %v1617 = vadd.f32 %v1541, %v1578
        %v1618 = vadd.f32 %v1542, %v1582
        %v1619 = vadd.f32 %v1543, %v1578
        %v1620 = vadd.f32 %v1544, %v1582
        %v1621 = vadd.f32 %v1545, %v1578
        %v1622 = vadd.f32 %v1546, %v1582
        %v1623 = vadd.f32 %v1547, %v1578
        %v1624 = vadd.f32 %v1548, %v1582
        %v1625 = vadd.f32 %v1549, %v1578
        %v1626 = vadd.f32 %v1550, %v1582
        %v1627 = vadd.f32 %v1551, %v1578
        %v1628 = vadd.f32 %v1552, %v1582
        %v1629 = vadd.f32 %v1553, %v1578
        %v1630 = vadd.f32 %v1554, %v1582
        %v1631 = vadd.f32 %v1555, %v1578
        %v1632 = vadd.f32 %v1556, %v1582
        %v1633 = vadd.f32 %v1557, %v1578
        %v1634 = vadd.f32 %v1558, %v1582
        %v1635 = vadd.f32 %v1559, %v1578
        %v1636 = vadd.f32 %v1560, %v1582
        %v1637 = vadd.f32 %v1561, %v1578
        %v1638 = vadd.f32 %v1562, %v1582
        %v1639 = vadd.f32 %v1563, %v1578
        %v1640 = vadd.f32 %v1564, %v1582
        %v1641 = vadd.f32 %v1565, %v1578
        %v1642 = vadd.f32 %v1566, %v1582
        %v1643 = vadd.f32 %v1567, %v1578
        %v1644 = vadd.f32 %v1568, %v1582
        %v1645 = vadd.f32 %v1569, %v1578
        %v1646 = vadd.f32 %v1570, %v1582
        %v1647 = vadd.f32 %v1571, %v1578
        %v1648 = vadd.f32 %v1572, %v1582
        %v1649 = vmax.f32 %v1585, 0.0
        %v1650 = vmax.f32 %v1586, 0.0
        %v1651 = vmax.f32 %v1587, 0.0
        %v1652 = vmax.f32 %v1588, 0.0
        %v1653 = vmax.f32 %v1589, 0.0
        %v1654 = vmax.f32 %v1590, 0.0
        %v1655 = vmax.f32 %v1591, 0.0
        %v1656 = vmax.f32 %v1592, 0.0
        %v1657 = vmax.f32 %v1593, 0.0
        %v1658 = vmax.f32 %v1594, 0.0
        %v1659 = vmax.f32 %v1595, 0.0
        %v1660 = vmax.f32 %v1596, 0.0
        %v1661 = vmax.f32 %v1597, 0.0
        %v1662 = vmax.f32 %v1598, 0.0
        %v1663 = vmax.f32 %v1599, 0.0
        %v1664 = vmax.f32 %v1600, 0.0
        %v1665 = vmax.f32 %v1601, 0.0
        %v1666 = vmax.f32 %v1602, 0.0
        %v1667 = vmax.f32 %v1603, 0.0
        %v1668 = vmax.f32 %v1604, 0.0
        %v1669 = vmax.f32 %v1605, 0.0
        %v1670 = vmax.f32 %v1606, 0.0
        %v1671 = vmax.f32 %v1607, 0.0
        %v1672 = vmax.f32 %v1608, 0.0
        %v1673 = vmax.f32 %v1609, 0.0
        %v1674 = vmax.f32 %v1610, 0.0
        %v1675 = vmax.f32 %v1611, 0.0
        %v1676 = vmax.f32 %v1612, 0.0
        %v1677 = vmax.f32 %v1613, 0.0
        %v1678 = vmax.f32 %v1614, 0.0
        %v1679 = vmax.f32 %v1615, 0.0
        %v1680 = vmax.f32 %v1616, 0.0
        %v1681 = vmax.f32 %v1617, 0.0
        %v1682 = vmax.f32 %v1618, 0.0
        %v1683 = vmax.f32 %v1619, 0.0
        %v1684 = vmax.f32 %v1620, 0.0
        %v1685 = vmax.f32 %v1621, 0.0
        %v1686 = vmax.f32 %v1622, 0.0
        %v1687 = vmax.f32 %v1623, 0.0
        %v1688 = vmax.f32 %v1624, 0.0
        %v1689 = vmax.f32 %v1625, 0.0
        %v1690 = vmax.f32 %v1626, 0.0
        %v1691 = vmax.f32 %v1627, 0.0
        %v1692 = vmax.f32 %v1628, 0.0
        %v1693 = vmax.f32 %v1629, 0.0
        %v1694 = vmax.f32 %v1630, 0.0
        %v1695 = vmax.f32 %v1631, 0.0
        %v1696 = vmax.f32 %v1632, 0.0
        %v1697 = vmax.f32 %v1633, 0.0
        %v1698 = vmax.f32 %v1634, 0.0
        %v1699 = vmax.f32 %v1635, 0.0
        %v1700 = vmax.f32 %v1636, 0.0
        %v1701 = vmax.f32 %v1637, 0.0
        %v1702 = vmax.f32 %v1638, 0.0
        %v1703 = vmax.f32 %v1639, 0.0
        %v1704 = vmax.f32 %v1640, 0.0
        %v1705 = vmax.f32 %v1641, 0.0
        %v1706 = vmax.f32 %v1642, 0.0
        %v1707 = vmax.f32 %v1643, 0.0
        %v1708 = vmax.f32 %v1644, 0.0
        %v1709 = vmax.f32 %v1645, 0.0
        %v1710 = vmax.f32 %v1646, 0.0
        %v1711 = vmax.f32 %v1647, 0.0
        %v1712 = vmax.f32 %v1648, 0.0
        %1713 = vst [vmem:[%s190] sm:$0xff] %v1649
        %1714 = vst [vmem:[%s190 + $0x8] sm:$0xff] %v1650
        %1715 = vst [vmem:[%s190 + $0x10] sm:$0xff] %v1651
        %1716 = vst [vmem:[%s190 + $0x18] sm:$0xff] %v1652
        %1717 = vst [vmem:[%s190 + $0x20] sm:$0xff] %v1653
        %1718 = vst [vmem:[%s190 + $0x28] sm:$0xff] %v1654
        %1719 = vst [vmem:[%s190 + $0x30] sm:$0xff] %v1655
        %1720 = vst [vmem:[%s190 + $0x38] sm:$0xff] %v1656
        %1721 = vst [vmem:[%s190 + $0x40] sm:$0xff] %v1657
        %1722 = vst [vmem:[%s190 + $0x48] sm:$0xff] %v1658
        %1723 = vst [vmem:[%s190 + $0x50] sm:$0xff] %v1659
        %1724 = vst [vmem:[%s190 + $0x58] sm:$0xff] %v1660
        %1725 = vst [vmem:[%s190 + $0x60] sm:$0xff] %v1661
        %1726 = vst [vmem:[%s190 + $0x68] sm:$0xff] %v1662
        %1727 = vst [vmem:[%s190 + $0x70] sm:$0xff] %v1663
        %1728 = vst [vmem:[%s190 + $0x78] sm:$0xff] %v1664
        %1729 = vst [vmem:[%s190 + $0x80] sm:$0xff] %v1665
        %1730 = vst [vmem:[%s190 + $0x88] sm:$0xff] %v1666
        %1731 = vst [vmem:[%s190 + $0x90] sm:$0xff] %v1667
        %1732 = vst [vmem:[%s190 + $0x98] sm:$0xff] %v1668
        %1733 = vst [vmem:[%s190 + $0xa0] sm:$0xff] %v1669
        %1734 = vst [vmem:[%s190 + $0xa8] sm:$0xff] %v1670
        %1735 = vst [vmem:[%s190 + $0xb0] sm:$0xff] %v1671
        %1736 = vst [vmem:[%s190 + $0xb8] sm:$0xff] %v1672
        %1737 = vst [vmem:[%s190 + $0xc0] sm:$0xff] %v1673
        %1738 = vst [vmem:[%s190 + $0xc8] sm:$0xff] %v1674
        %1739 = vst [vmem:[%s190 + $0xd0] sm:$0xff] %v1675
        %1740 = vst [vmem:[%s190 + $0xd8] sm:$0xff] %v1676
        %1741 = vst [vmem:[%s190 + $0xe0] sm:$0xff] %v1677
        %1742 = vst [vmem:[%s190 + $0xe8] sm:$0xff] %v1678
        %1743 = vst [vmem:[%s190 + $0xf0] sm:$0xff] %v1679
        %1744 = vst [vmem:[%s190 + $0xf8] sm:$0xff] %v1680
        %1745 = vst [vmem:[%s190 + $0x100] sm:$0xff] %v1681
        %1746 = vst [vmem:[%s190 + $0x108] sm:$0xff] %v1682
        %1747 = vst [vmem:[%s190 + $0x110] sm:$0xff] %v1683
        %1748 = vst [vmem:[%s190 + $0x118] sm:$0xff] %v1684
        %1749 = vst [vmem:[%s190 + $0x120] sm:$0xff] %v1685
        %1750 = vst [vmem:[%s190 + $0x128] sm:$0xff] %v1686
        %1751 = vst [vmem:[%s190 + $0x130] sm:$0xff] %v1687
        %1752 = vst [vmem:[%s190 + $0x138] sm:$0xff] %v1688
        %1753 = vst [vmem:[%s190 + $0x140] sm:$0xff] %v1689
        %1754 = vst [vmem:[%s190 + $0x148] sm:$0xff] %v1690
        %1755 = vst [vmem:[%s190 + $0x150] sm:$0xff] %v1691
        %1756 = vst [vmem:[%s190 + $0x158] sm:$0xff] %v1692
        %1757 = vst [vmem:[%s190 + $0x160] sm:$0xff] %v1693
        %1758 = vst [vmem:[%s190 + $0x168] sm:$0xff] %v1694
        %1759 = vst [vmem:[%s190 + $0x170] sm:$0xff] %v1695
        %1760 = vst [vmem:[%s190 + $0x178] sm:$0xff] %v1696
        %1761 = vst [vmem:[%s190 + $0x180] sm:$0xff] %v1697
        %1762 = vst [vmem:[%s190 + $0x188] sm:$0xff] %v1698
        %1763 = vst [vmem:[%s190 + $0x190] sm:$0xff] %v1699
        %1764 = vst [vmem:[%s190 + $0x198] sm:$0xff] %v1700
        %1765 = vst [vmem:[%s190 + $0x1a0] sm:$0xff] %v1701
        %1766 = vst [vmem:[%s190 + $0x1a8] sm:$0xff] %v1702
        %1767 = vst [vmem:[%s190 + $0x1b0] sm:$0xff] %v1703
        %1768 = vst [vmem:[%s190 + $0x1b8] sm:$0xff] %v1704
        %1769 = vst [vmem:[%s190 + $0x1c0] sm:$0xff] %v1705
        %1770 = vst [vmem:[%s190 + $0x1c8] sm:$0xff] %v1706
        %1771 = vst [vmem:[%s190 + $0x1d0] sm:$0xff] %v1707
        %1772 = vst [vmem:[%s190 + $0x1d8] sm:$0xff] %v1708
        %1773 = vst [vmem:[%s190 + $0x1e0] sm:$0xff] %v1709
        %1774 = vst [vmem:[%s190 + $0x1e8] sm:$0xff] %v1710
        %1775 = vst [vmem:[%s190 + $0x1f0] sm:$0xff] %v1711
        %1776 = vst [vmem:[%s190 + $0x1f8] sm:$0xff] %v1712
        %s1777 = sand.u32 %s115, 1
        %s1778 = scalar_lea.sflag [#allocation3], %s1777
        %s1779 = sand.u32 %s115, 1
        %s1780 = smul.addr %s1779, 512
        %s1781 = scalar_lea.vmem [#allocation2], %s1780
        // Predicated region
        $region37: #{tpu_custom_call.1} parent=35 // pred_check
          %p1782 = pneg %p125
        $region38: #{tpu_custom_call.1} parent=35 // pred_check_branch
          %1784 = sbr.rel (%p1782) target = $region40
        $region39: #{tpu_custom_call.1} parent=35 // pred_region
          %s1786 = ssub.s32 8192, 8192
          %1787 = vsyncadd %s1778, %s1786
          %s1788 = smul.addr %s18, 64
          %s1789 = smul.addr %s1788, 128
          %s1790 = scalar_lea.hbm %s4, %s1789
          %s1791 = sshll.u32 %s1781, 4
          %s1792 = int_to_ptr.vmem [resolvable:$true] %s1791
          %1797 = dma.vmem_to_hbm [thread:$0]  %s1792, 8192, %s1790, %s1778, 256, 256, 16
        $region40: #{tpu_custom_call.1} parent=35 // pred_fallthru
          _
      $region36: #{tpu_custom_call.1} parent=5 // pred_fallthru
        _
      %p1798 = scmp.le.s32.totalorder 2, %s13
      // Predicated region
      $region41: #{tpu_custom_call.1} parent=5 // pred_check
        %p1799 = pneg %p1798
      $region42: #{tpu_custom_call.1} parent=5 // pred_check_branch
        %1801 = sbr.rel (%p1799) target = $region44
      $region43: #{tpu_custom_call.1} parent=5 // pred_region
        %s1802 = ssub.s32 %s13, 2
        // Predicated region
        $region45: #{tpu_custom_call.1} parent=43 // pred_check
          %p1803 = pneg %p131
        $region46: #{tpu_custom_call.1} parent=43 // pred_check_branch
          %1805 = sbr.rel (%p1803) target = $region48
        $region47: #{tpu_custom_call.1} parent=43 // pred_region
          %s1806 = sand.u32 %s116, 1
          %s1807 = scalar_lea.sflag [#allocation3], %s1806
          %s1808 = sand.u32 %s116, 1
          %s1809 = smul.addr %s1808, 512
          %s1810 = scalar_lea.vmem [#allocation2], %s1809
          %1811 = dma.done %s1807, 8192
        $region48: #{tpu_custom_call.1} parent=43 // pred_fallthru
          _
      $region44: #{tpu_custom_call.1} parent=5 // pred_fallthru
        _
    $region6: #{tpu_custom_call.1} parent=1 // loop_footer
      %s17 = sadd.s32 1, %s13
    $region7: #{tpu_custom_call.1} parent=1 // loop_footer_branch
      %12 = sbr.rel target = $region3
    $region8: #{tpu_custom_call.1} parent=1 // loop_exit
      _
    %1812 = vsyncpa [#allocation3], 1
    %s1813 = scalar_lea.sflag [#allocation3], 1
    %1814 = vsyncpa %s1813, 1

</llo_original>
